<compile_context>
chip_gen: v5e
topology: v5e:2x2
jax: 0.10.0
libtpu: 0.0.40
codegen_flags: <defaults>
</compile_context>

<pallas_src>
import math

import jax
import jax.numpy as jnp
from jax import lax
from jax.experimental import pallas as pl
from jax.experimental.pallas import tpu as pltpu

# ---- model / problem configuration (small, consistent with the module) ----
D_MODEL = 32
N_HEADS = 2
B = 2
L_Q = 16      # query / key / value sequence length
L_AGG = 8     # aggregates ("pack") sequence length
DH = D_MODEL * N_HEADS   # per-attention projection width (head_dim == d_model)


# ------------------------------- the wrapper --------------------------------
def luna_forward(query, key, value, aggregates, params):
    Bn, Lq, D = query.shape
    _, Lk, _ = key.shape
    _, La, _ = aggregates.shape
    H = N_HEADS
    dh = D                      # head dim == d_model in this module
    DHp = D * H
    inv_temp = 1.0 / math.sqrt(float(D))   # ScaledDotProductAttention(d_model)
    bf16 = jnp.bfloat16

    # --- flatten batch into rows; split / restack / pre-cast weights (cheap, once) ---
    q2 = query.reshape(Bn * Lq, D)
    k2 = key.reshape(Bn * Lk, D)
    v2 = value.reshape(Bn * Lk, D)
    a2 = aggregates.reshape(Bn * La, D)

    w_in_p, b_in_p = params["pack_w_in"], params["pack_b_in"]
    w_in_u, b_in_u = params["unpack_w_in"], params["unpack_b_in"]

    wq_p = w_in_p[0].astype(bf16); bq_p = b_in_p[0][None, :]
    wk_p = w_in_p[1].astype(bf16); bk_p = b_in_p[1][None, :]
    wv_p = w_in_p[2].astype(bf16); bv_p = b_in_p[2][None, :]
    wo_p = params["pack_w_out"].astype(bf16); bo_p = params["pack_b_out"]

    wq_u = w_in_u[0].astype(bf16); bq_u = b_in_u[0][None, :]
    # unpack K/V projections share their input (packed context) -> fuse the weights
    wkv_u = jnp.concatenate([w_in_u[1], w_in_u[2]], axis=0).astype(bf16)   # (2*DH, D)
    bkv_u = jnp.concatenate([b_in_u[1], b_in_u[2]], axis=0)[None, :]       # (1, 2*DH)
    wo_u = params["unpack_w_out"].astype(bf16); bo_u = params["unpack_b_out"]

    # ------------------------------ kernel body ------------------------------
    def _linear(x, w_ref, b_ref):
        """y = x @ W.T + b  (torch nn.Linear layout, bf16 operands, f32 accumulate)."""
        dn = (((1,), (1,)), ((), ()))
        y = lax.dot_general(x.astype(bf16), w_ref[...], dn,
                            preferred_element_type=jnp.float32)
        return y + b_ref[...]

    def _attention(q, k, v, ctx_ref, lq, lk):
        """Scaled-dot-product attention; q already carries the 1/temperature scale.

        q: (Bn*lq, DH), k/v: (Bn*lk, DH).  Per-(batch, head) contexts are written
        into the f32 VMEM scratch ctx_ref at static row/lane offsets.
        """
        dn = (((1,), (1,)), ((), ()))   # row @ row.T
        for b in range(Bn):             # static unroll (Bn == 2)
            qb = q[b * lq:(b + 1) * lq, :]
            kb = k[b * lk:(b + 1) * lk, :]
            vb = v[b * lk:(b + 1) * lk, :]
            for h in range(H):          # static unroll (H == 2)
                lo, hi = h * dh, (h + 1) * dh
                s = lax.dot_general(qb[:, lo:hi].astype(bf16),
                                    kb[:, lo:hi].astype(bf16),
                                    dn, preferred_element_type=jnp.float32)
                s = s - jnp.max(s, axis=-1, keepdims=True)          # stable, f32
                p = jnp.exp(s)
                p = p * pl.reciprocal(jnp.sum(p, axis=-1, keepdims=True), approx=True)
                # nn.Dropout is identity at inference time.
                ctx = jnp.dot(p.astype(bf16), vb[:, lo:hi].astype(bf16),
                              preferred_element_type=jnp.float32)
                ctx_ref[b * lq:(b + 1) * lq, lo:hi] = ctx

    def kernel(q_ref, k_ref, v_ref, agg_ref,
               wq_p_ref, bq_p_ref, wk_p_ref, bk_p_ref, wv_p_ref, bv_p_ref,
               wo_p_ref, bo_p_ref,
               wq_u_ref, bq_u_ref, wkv_u_ref, bkv_u_ref, wo_u_ref, bo_u_ref,
               unpacked_ref, packed_ref, ctx_p_ref, ctx_u_ref):
        # ---------- pack attention: MultiHeadAttention(aggregates, key, value) ----------
        q_p = _linear(agg_ref[...], wq_p_ref, bq_p_ref) * inv_temp      # (Bn*La, DH)
        k_p = _linear(k_ref[...], wk_p_ref, bk_p_ref)                   # (Bn*Lk, DH)
        v_p = _linear(v_ref[...], wv_p_ref, bv_p_ref)                   # (Bn*Lk, DH)
        _attention(q_p, k_p, v_p, ctx_p_ref, La, Lk)
        packed = _linear(ctx_p_ref[...], wo_p_ref, bo_p_ref)            # (Bn*La, D)

        # --------- unpack attention: MultiHeadAttention(query, packed, packed) ----------
        q_u = _linear(q_ref[...], wq_u_ref, bq_u_ref) * inv_temp        # (Bn*Lq, DH)
        kv_u = _linear(packed, wkv_u_ref, bkv_u_ref)                    # (Bn*La, 2*DH), 128 lanes
        _attention(q_u, kv_u[:, :DHp], kv_u[:, DHp:], ctx_u_ref, Lq, La)
        unpacked = _linear(ctx_u_ref[...], wo_u_ref, bo_u_ref)          # (Bn*Lq, D)

        packed_ref[...] = packed.astype(packed_ref.dtype)
        unpacked_ref[...] = unpacked.astype(unpacked_ref.dtype)

    # ------------------------------ pallas_call ------------------------------
    args = (q2, k2, v2, a2,
            wq_p, bq_p, wk_p, bk_p, wv_p, bv_p, wo_p, bo_p,
            wq_u, bq_u, wkv_u, bkv_u, wo_u, bo_u)

    def vmem():
        return pl.BlockSpec(memory_space=pltpu.MemorySpace.VMEM)

    macs = (Bn * La * DHp * D + 2 * Bn * Lk * DHp * D + Bn * La * D * DHp      # pack linears
            + 2 * Bn * H * La * Lk * dh                                        # pack scores+ctx
            + Bn * Lq * DHp * D + Bn * La * (2 * DHp) * D + Bn * Lq * D * DHp  # unpack linears
            + 2 * Bn * H * Lq * La * dh)                                       # unpack scores+ctx
    cost = pl.CostEstimate(
        flops=2 * macs,
        transcendentals=Bn * H * (La * Lk + Lq * La) + Bn * H * (La + Lq),
        bytes_accessed=sum(int(x.size) * x.dtype.itemsize for x in args)
                       + (Bn * Lq * D + Bn * La * D) * 4,
    )

    unpacked2, packed2 = pl.pallas_call(
        kernel,
        out_shape=[jax.ShapeDtypeStruct((Bn * Lq, D), jnp.float32),   # unpacked_context
                   jax.ShapeDtypeStruct((Bn * La, D), jnp.float32)],  # packed_context
        in_specs=[vmem() for _ in args],
        out_specs=[vmem(), vmem()],
        scratch_shapes=[pltpu.VMEM((Bn * La, DHp), jnp.float32),      # pack ctx scratch
                        pltpu.VMEM((Bn * Lq, DHp), jnp.float32)],     # unpack ctx scratch
        cost_estimate=cost,
    )(*args)

    return unpacked2.reshape(Bn, Lq, D), packed2.reshape(Bn, La, D)


luna_forward_jit = jax.jit(luna_forward)


# ----------------------------- plain-JAX reference ---------------------------
def _mha_ref(xq, xk, xv, w_in, b_in, w_out, b_out):
    Bsz = xq.shape[0]

    def proj(x, w, bias):
        y = jnp.einsum('bld,ed->ble', x, w) + bias
        return y.reshape(Bsz, x.shape[1], N_HEADS, D_MODEL).transpose(0, 2, 1, 3)

    q = proj(xq, w_in[0], b_in[0])
    k = proj(xk, w_in[1], b_in[1])
    v = proj(xv, w_in[2], b_in[2])
    attn = jnp.einsum('bhqd,bhkd->bhqk', q, k) / jnp.sqrt(jnp.float32(D_MODEL))
    attn = jax.nn.softmax(attn, axis=-1)
    ctx = jnp.einsum('bhqk,bhkd->bhqd', attn, v)
    ctx = ctx.transpose(0, 2, 1, 3).reshape(Bsz, -1, DH)
    return jnp.einsum('ble,de->bld', ctx, w_out) + b_out[0]


def luna_ref(query, key, value, aggregates, p):
    packed = _mha_ref(aggregates, key, value,
                      p["pack_w_in"], p["pack_b_in"], p["pack_w_out"], p["pack_b_out"])
    unpacked = _mha_ref(query, packed, packed,
                        p["unpack_w_in"], p["unpack_b_in"], p["unpack_w_out"], p["unpack_b_out"])
    return unpacked, packed


# ---------------------------------- main ------------------------------------
if __name__ == "__main__":
    key0 = jax.random.PRNGKey(0)
    ks = jax.random.split(key0, 12)

    # deterministic synthetic parameters (torch nn.Linear layout: weight (out, in))
    params = {
        "pack_w_in":    0.05 * jax.random.normal(ks[0], (3, DH, D_MODEL), jnp.float32),
        "pack_b_in":    0.01 * jax.random.normal(ks[1], (3, DH), jnp.float32),
        "pack_w_out":   0.05 * jax.random.normal(ks[2], (D_MODEL, DH), jnp.float32),
        "pack_b_out":   0.01 * jax.random.normal(ks[3], (1, D_MODEL), jnp.float32),
        "unpack_w_in":  0.05 * jax.random.normal(ks[4], (3, DH, D_MODEL), jnp.float32),
        "unpack_b_in":  0.01 * jax.random.normal(ks[5], (3, DH), jnp.float32),
        "unpack_w_out": 0.05 * jax.random.normal(ks[6], (D_MODEL, DH), jnp.float32),
        "unpack_b_out": 0.01 * jax.random.normal(ks[7], (1, D_MODEL), jnp.float32),
    }

    query      = jax.random.normal(ks[8],  (B, L_Q, D_MODEL), jnp.float32)
    key_in     = jax.random.normal(ks[9],  (B, L_Q, D_MODEL), jnp.float32)
    value      = jax.random.normal(ks[10], (B, L_Q, D_MODEL), jnp.float32)
    aggregates = jax.random.normal(ks[11], (B, L_AGG, D_MODEL), jnp.float32)

    unpacked, packed = luna_forward_jit(query, key_in, value, aggregates, params)
    jax.block_until_ready((unpacked, packed))

    # correctness check against the pure-f32 JAX reference
    # (kernel uses bf16 matmul operands + approx reciprocal -> loosened tolerance)
    unpacked_ref, packed_ref = luna_ref(query, key_in, value, aggregates, params)
    assert jnp.allclose(packed, packed_ref, atol=2e-2, rtol=2e-2)
    assert jnp.allclose(unpacked, unpacked_ref, atol=2e-2, rtol=2e-2)

    print("KERNEL_OK")
</pallas_src>

<mosaic_0001>
module attributes {stable_mosaic.version = 11 : i64} {
  func.func @kernel(%arg0: memref<32x32xf32, #tpu.memory_space<vmem>>, %arg1: memref<32x32xf32, #tpu.memory_space<vmem>>, %arg2: memref<32x32xf32, #tpu.memory_space<vmem>>, %arg3: memref<16x32xf32, #tpu.memory_space<vmem>>, %arg4: memref<64x32xbf16, #tpu.memory_space<vmem>>, %arg5: memref<1x64xf32, #tpu.memory_space<vmem>>, %arg6: memref<64x32xbf16, #tpu.memory_space<vmem>>, %arg7: memref<1x64xf32, #tpu.memory_space<vmem>>, %arg8: memref<64x32xbf16, #tpu.memory_space<vmem>>, %arg9: memref<1x64xf32, #tpu.memory_space<vmem>>, %arg10: memref<32x64xbf16, #tpu.memory_space<vmem>>, %arg11: memref<1x32xf32, #tpu.memory_space<vmem>>, %arg12: memref<64x32xbf16, #tpu.memory_space<vmem>>, %arg13: memref<1x64xf32, #tpu.memory_space<vmem>>, %arg14: memref<128x32xbf16, #tpu.memory_space<vmem>>, %arg15: memref<1x128xf32, #tpu.memory_space<vmem>>, %arg16: memref<32x64xbf16, #tpu.memory_space<vmem>>, %arg17: memref<1x32xf32, #tpu.memory_space<vmem>>, %arg18: memref<32x32xf32, #tpu.memory_space<vmem>>, %arg19: memref<16x32xf32, #tpu.memory_space<vmem>>, %arg20: memref<16x64xf32, #tpu.memory_space<vmem>>, %arg21: memref<32x64xf32, #tpu.memory_space<vmem>>) attributes {dimension_semantics = [], scalar_prefetch = 0 : i64, scratch_operands = 2 : i64, tpu.core_type = #tpu.core_type<tc>} {
    %c0 = arith.constant 0 : index
    %c0_0 = arith.constant 0 : index
    %0 = vector.load %arg3[%c0, %c0_0] : memref<16x32xf32, #tpu.memory_space<vmem>>, vector<16x32xf32>
    %1 = arith.truncf %0 : vector<16x32xf32> to vector<16x32xbf16>
    %c0_1 = arith.constant 0 : index
    %c0_2 = arith.constant 0 : index
    %2 = vector.load %arg4[%c0_1, %c0_2] : memref<64x32xbf16, #tpu.memory_space<vmem>>, vector<64x32xbf16>
    %cst = arith.constant dense<0.000000e+00> : vector<16x64xf32>
    %3 = tpu.matmul %1, %2, %cst {dimension_numbers = #tpu.dot_dimension_numbers<[1], [1], [0], [0], [0, 0, 1, 0], [], []>} : vector<16x32xbf16>, vector<64x32xbf16>, vector<16x64xf32> -> vector<16x64xf32>
    %c0_3 = arith.constant 0 : index
    %c0_4 = arith.constant 0 : index
    %4 = vector.load %arg5[%c0_3, %c0_4] : memref<1x64xf32, #tpu.memory_space<vmem>>, vector<1x64xf32>
    %5 = vector.broadcast %4 : vector<1x64xf32> to vector<16x64xf32>
    %6 = arith.addf %3, %5 : vector<16x64xf32>
    %cst_5 = arith.constant 0.176776692 : f32
    %7 = vector.broadcast %cst_5 : f32 to vector<16x64xf32>
    %8 = arith.mulf %6, %7 : vector<16x64xf32>
    %c0_6 = arith.constant 0 : index
    %c0_7 = arith.constant 0 : index
    %9 = vector.load %arg1[%c0_6, %c0_7] : memref<32x32xf32, #tpu.memory_space<vmem>>, vector<32x32xf32>
    %10 = arith.truncf %9 : vector<32x32xf32> to vector<32x32xbf16>
    %c0_8 = arith.constant 0 : index
    %c0_9 = arith.constant 0 : index
    %11 = vector.load %arg6[%c0_8, %c0_9] : memref<64x32xbf16, #tpu.memory_space<vmem>>, vector<64x32xbf16>
    %cst_10 = arith.constant dense<0.000000e+00> : vector<32x64xf32>
    %12 = tpu.matmul %10, %11, %cst_10 {dimension_numbers = #tpu.dot_dimension_numbers<[1], [1], [0], [0], [0, 0, 1, 0], [], []>} : vector<32x32xbf16>, vector<64x32xbf16>, vector<32x64xf32> -> vector<32x64xf32>
    %c0_11 = arith.constant 0 : index
    %c0_12 = arith.constant 0 : index
    %13 = vector.load %arg7[%c0_11, %c0_12] : memref<1x64xf32, #tpu.memory_space<vmem>>, vector<1x64xf32>
    %14 = vector.broadcast %13 : vector<1x64xf32> to vector<32x64xf32>
    %15 = arith.addf %12, %14 : vector<32x64xf32>
    %c0_13 = arith.constant 0 : index
    %c0_14 = arith.constant 0 : index
    %16 = vector.load %arg2[%c0_13, %c0_14] : memref<32x32xf32, #tpu.memory_space<vmem>>, vector<32x32xf32>
    %17 = arith.truncf %16 : vector<32x32xf32> to vector<32x32xbf16>
    %c0_15 = arith.constant 0 : index
    %c0_16 = arith.constant 0 : index
    %18 = vector.load %arg8[%c0_15, %c0_16] : memref<64x32xbf16, #tpu.memory_space<vmem>>, vector<64x32xbf16>
    %cst_17 = arith.constant dense<0.000000e+00> : vector<32x64xf32>
    %19 = tpu.matmul %17, %18, %cst_17 {dimension_numbers = #tpu.dot_dimension_numbers<[1], [1], [0], [0], [0, 0, 1, 0], [], []>} : vector<32x32xbf16>, vector<64x32xbf16>, vector<32x64xf32> -> vector<32x64xf32>
    %c0_18 = arith.constant 0 : index
    %c0_19 = arith.constant 0 : index
    %20 = vector.load %arg9[%c0_18, %c0_19] : memref<1x64xf32, #tpu.memory_space<vmem>>, vector<1x64xf32>
    %21 = vector.broadcast %20 : vector<1x64xf32> to vector<32x64xf32>
    %22 = arith.addf %19, %21 : vector<32x64xf32>
    %23 = vector.extract_strided_slice %8 {offsets = [0, 0], sizes = [8, 64], strides = [1, 1]} : vector<16x64xf32> to vector<8x64xf32>
    %24 = vector.extract_strided_slice %15 {offsets = [0, 0], sizes = [16, 64], strides = [1, 1]} : vector<32x64xf32> to vector<16x64xf32>
    %25 = vector.extract_strided_slice %22 {offsets = [0, 0], sizes = [16, 64], strides = [1, 1]} : vector<32x64xf32> to vector<16x64xf32>
    %26 = vector.extract_strided_slice %23 {offsets = [0, 0], sizes = [8, 32], strides = [1, 1]} : vector<8x64xf32> to vector<8x32xf32>
    %27 = arith.truncf %26 : vector<8x32xf32> to vector<8x32xbf16>
    %28 = vector.extract_strided_slice %24 {offsets = [0, 0], sizes = [16, 32], strides = [1, 1]} : vector<16x64xf32> to vector<16x32xf32>
    %29 = arith.truncf %28 : vector<16x32xf32> to vector<16x32xbf16>
    %cst_20 = arith.constant dense<0.000000e+00> : vector<8x16xf32>
    %30 = tpu.matmul %27, %29, %cst_20 {dimension_numbers = #tpu.dot_dimension_numbers<[1], [1], [0], [0], [0, 0, 1, 0], [], []>} : vector<8x32xbf16>, vector<16x32xbf16>, vector<8x16xf32> -> vector<8x16xf32>
    %cst_21 = arith.constant dense<0xFF800000> : vector<8xf32>
    %31 = vector.multi_reduction <maximumf>, %30, %cst_21 [1] : vector<8x16xf32> to vector<8xf32>
    %32 = vector.shape_cast %31 : vector<8xf32> to vector<8x1xf32>
    %33 = vector.broadcast %32 : vector<8x1xf32> to vector<8x16xf32>
    %34 = arith.subf %30, %33 : vector<8x16xf32>
    %35 = math.exp %34 : vector<8x16xf32>
    %cst_22 = arith.constant dense<0.000000e+00> : vector<8xf32>
    %36 = vector.multi_reduction <add>, %35, %cst_22 [1] : vector<8x16xf32> to vector<8xf32>
    %37 = vector.shape_cast %36 : vector<8xf32> to vector<8x1xf32>
    %38 = tpu.reciprocal %37 {approx = true} : vector<8x1xf32> -> vector<8x1xf32>
    %39 = vector.broadcast %38 : vector<8x1xf32> to vector<8x16xf32>
    %40 = arith.mulf %35, %39 : vector<8x16xf32>
    %41 = arith.truncf %40 : vector<8x16xf32> to vector<8x16xbf16>
    %42 = vector.extract_strided_slice %25 {offsets = [0, 0], sizes = [16, 32], strides = [1, 1]} : vector<16x64xf32> to vector<16x32xf32>
    %43 = arith.truncf %42 : vector<16x32xf32> to vector<16x32xbf16>
    %cst_23 = arith.constant dense<0.000000e+00> : vector<8x32xf32>
    %44 = tpu.matmul %41, %43, %cst_23 {dimension_numbers = #tpu.dot_dimension_numbers<[1], [0], [0], [1], [0, 0, 1, 1], [], []>} : vector<8x16xbf16>, vector<16x32xbf16>, vector<8x32xf32> -> vector<8x32xf32>
    %c0_24 = arith.constant 0 : index
    %c0_25 = arith.constant 0 : index
    %45 = vector.load %arg20[%c0_24, %c0_25] : memref<16x64xf32, #tpu.memory_space<vmem>>, vector<8x32xf32>
    tpu.vector_store %arg20[%c0_24, %c0_25], %44 {strides = array<i32>} : memref<16x64xf32, #tpu.memory_space<vmem>>, vector<8x32xf32>,
    %46 = vector.extract_strided_slice %23 {offsets = [0, 32], sizes = [8, 32], strides = [1, 1]} : vector<8x64xf32> to vector<8x32xf32>
    %47 = arith.truncf %46 : vector<8x32xf32> to vector<8x32xbf16>
    %48 = vector.extract_strided_slice %24 {offsets = [0, 32], sizes = [16, 32], strides = [1, 1]} : vector<16x64xf32> to vector<16x32xf32>
    %49 = arith.truncf %48 : vector<16x32xf32> to vector<16x32xbf16>
    %cst_26 = arith.constant dense<0.000000e+00> : vector<8x16xf32>
    %50 = tpu.matmul %47, %49, %cst_26 {dimension_numbers = #tpu.dot_dimension_numbers<[1], [1], [0], [0], [0, 0, 1, 0], [], []>} : vector<8x32xbf16>, vector<16x32xbf16>, vector<8x16xf32> -> vector<8x16xf32>
    %cst_27 = arith.constant dense<0xFF800000> : vector<8xf32>
    %51 = vector.multi_reduction <maximumf>, %50, %cst_27 [1] : vector<8x16xf32> to vector<8xf32>
    %52 = vector.shape_cast %51 : vector<8xf32> to vector<8x1xf32>
    %53 = vector.broadcast %52 : vector<8x1xf32> to vector<8x16xf32>
    %54 = arith.subf %50, %53 : vector<8x16xf32>
    %55 = math.exp %54 : vector<8x16xf32>
    %cst_28 = arith.constant dense<0.000000e+00> : vector<8xf32>
    %56 = vector.multi_reduction <add>, %55, %cst_28 [1] : vector<8x16xf32> to vector<8xf32>
    %57 = vector.shape_cast %56 : vector<8xf32> to vector<8x1xf32>
    %58 = tpu.reciprocal %57 {approx = true} : vector<8x1xf32> -> vector<8x1xf32>
    %59 = vector.broadcast %58 : vector<8x1xf32> to vector<8x16xf32>
    %60 = arith.mulf %55, %59 : vector<8x16xf32>
    %61 = arith.truncf %60 : vector<8x16xf32> to vector<8x16xbf16>
    %62 = vector.extract_strided_slice %25 {offsets = [0, 32], sizes = [16, 32], strides = [1, 1]} : vector<16x64xf32> to vector<16x32xf32>
    %63 = arith.truncf %62 : vector<16x32xf32> to vector<16x32xbf16>
    %cst_29 = arith.constant dense<0.000000e+00> : vector<8x32xf32>
    %64 = tpu.matmul %61, %63, %cst_29 {dimension_numbers = #tpu.dot_dimension_numbers<[1], [0], [0], [1], [0, 0, 1, 1], [], []>} : vector<8x16xbf16>, vector<16x32xbf16>, vector<8x32xf32> -> vector<8x32xf32>
    %c0_30 = arith.constant 0 : index
    %c32 = arith.constant 32 : index
    %65 = vector.load %arg20[%c0_30, %c32] : memref<16x64xf32, #tpu.memory_space<vmem>>, vector<8x32xf32>
    tpu.vector_store %arg20[%c0_30, %c32], %64 {strides = array<i32>} : memref<16x64xf32, #tpu.memory_space<vmem>>, vector<8x32xf32>,
    %66 = vector.extract_strided_slice %8 {offsets = [8, 0], sizes = [8, 64], strides = [1, 1]} : vector<16x64xf32> to vector<8x64xf32>
    %67 = vector.extract_strided_slice %15 {offsets = [16, 0], sizes = [16, 64], strides = [1, 1]} : vector<32x64xf32> to vector<16x64xf32>
    %68 = vector.extract_strided_slice %22 {offsets = [16, 0], sizes = [16, 64], strides = [1, 1]} : vector<32x64xf32> to vector<16x64xf32>
    %69 = vector.extract_strided_slice %66 {offsets = [0, 0], sizes = [8, 32], strides = [1, 1]} : vector<8x64xf32> to vector<8x32xf32>
    %70 = arith.truncf %69 : vector<8x32xf32> to vector<8x32xbf16>
    %71 = vector.extract_strided_slice %67 {offsets = [0, 0], sizes = [16, 32], strides = [1, 1]} : vector<16x64xf32> to vector<16x32xf32>
    %72 = arith.truncf %71 : vector<16x32xf32> to vector<16x32xbf16>
    %cst_31 = arith.constant dense<0.000000e+00> : vector<8x16xf32>
    %73 = tpu.matmul %70, %72, %cst_31 {dimension_numbers = #tpu.dot_dimension_numbers<[1], [1], [0], [0], [0, 0, 1, 0], [], []>} : vector<8x32xbf16>, vector<16x32xbf16>, vector<8x16xf32> -> vector<8x16xf32>
    %cst_32 = arith.constant dense<0xFF800000> : vector<8xf32>
    %74 = vector.multi_reduction <maximumf>, %73, %cst_32 [1] : vector<8x16xf32> to vector<8xf32>
    %75 = vector.shape_cast %74 : vector<8xf32> to vector<8x1xf32>
    %76 = vector.broadcast %75 : vector<8x1xf32> to vector<8x16xf32>
    %77 = arith.subf %73, %76 : vector<8x16xf32>
    %78 = math.exp %77 : vector<8x16xf32>
    %cst_33 = arith.constant dense<0.000000e+00> : vector<8xf32>
    %79 = vector.multi_reduction <add>, %78, %cst_33 [1] : vector<8x16xf32> to vector<8xf32>
    %80 = vector.shape_cast %79 : vector<8xf32> to vector<8x1xf32>
    %81 = tpu.reciprocal %80 {approx = true} : vector<8x1xf32> -> vector<8x1xf32>
    %82 = vector.broadcast %81 : vector<8x1xf32> to vector<8x16xf32>
    %83 = arith.mulf %78, %82 : vector<8x16xf32>
    %84 = arith.truncf %83 : vector<8x16xf32> to vector<8x16xbf16>
    %85 = vector.extract_strided_slice %68 {offsets = [0, 0], sizes = [16, 32], strides = [1, 1]} : vector<16x64xf32> to vector<16x32xf32>
    %86 = arith.truncf %85 : vector<16x32xf32> to vector<16x32xbf16>
    %cst_34 = arith.constant dense<0.000000e+00> : vector<8x32xf32>
    %87 = tpu.matmul %84, %86, %cst_34 {dimension_numbers = #tpu.dot_dimension_numbers<[1], [0], [0], [1], [0, 0, 1, 1], [], []>} : vector<8x16xbf16>, vector<16x32xbf16>, vector<8x32xf32> -> vector<8x32xf32>
    %c8 = arith.constant 8 : index
    %c0_35 = arith.constant 0 : index
    %88 = vector.load %arg20[%c8, %c0_35] : memref<16x64xf32, #tpu.memory_space<vmem>>, vector<8x32xf32>
    tpu.vector_store %arg20[%c8, %c0_35], %87 {strides = array<i32>} : memref<16x64xf32, #tpu.memory_space<vmem>>, vector<8x32xf32>,
    %89 = vector.extract_strided_slice %66 {offsets = [0, 32], sizes = [8, 32], strides = [1, 1]} : vector<8x64xf32> to vector<8x32xf32>
    %90 = arith.truncf %89 : vector<8x32xf32> to vector<8x32xbf16>
    %91 = vector.extract_strided_slice %67 {offsets = [0, 32], sizes = [16, 32], strides = [1, 1]} : vector<16x64xf32> to vector<16x32xf32>
    %92 = arith.truncf %91 : vector<16x32xf32> to vector<16x32xbf16>
    %cst_36 = arith.constant dense<0.000000e+00> : vector<8x16xf32>
    %93 = tpu.matmul %90, %92, %cst_36 {dimension_numbers = #tpu.dot_dimension_numbers<[1], [1], [0], [0], [0, 0, 1, 0], [], []>} : vector<8x32xbf16>, vector<16x32xbf16>, vector<8x16xf32> -> vector<8x16xf32>
    %cst_37 = arith.constant dense<0xFF800000> : vector<8xf32>
    %94 = vector.multi_reduction <maximumf>, %93, %cst_37 [1] : vector<8x16xf32> to vector<8xf32>
    %95 = vector.shape_cast %94 : vector<8xf32> to vector<8x1xf32>
    %96 = vector.broadcast %95 : vector<8x1xf32> to vector<8x16xf32>
    %97 = arith.subf %93, %96 : vector<8x16xf32>
    %98 = math.exp %97 : vector<8x16xf32>
    %cst_38 = arith.constant dense<0.000000e+00> : vector<8xf32>
    %99 = vector.multi_reduction <add>, %98, %cst_38 [1] : vector<8x16xf32> to vector<8xf32>
    %100 = vector.shape_cast %99 : vector<8xf32> to vector<8x1xf32>
    %101 = tpu.reciprocal %100 {approx = true} : vector<8x1xf32> -> vector<8x1xf32>
    %102 = vector.broadcast %101 : vector<8x1xf32> to vector<8x16xf32>
    %103 = arith.mulf %98, %102 : vector<8x16xf32>
    %104 = arith.truncf %103 : vector<8x16xf32> to vector<8x16xbf16>
    %105 = vector.extract_strided_slice %68 {offsets = [0, 32], sizes = [16, 32], strides = [1, 1]} : vector<16x64xf32> to vector<16x32xf32>
    %106 = arith.truncf %105 : vector<16x32xf32> to vector<16x32xbf16>
    %cst_39 = arith.constant dense<0.000000e+00> : vector<8x32xf32>
    %107 = tpu.matmul %104, %106, %cst_39 {dimension_numbers = #tpu.dot_dimension_numbers<[1], [0], [0], [1], [0, 0, 1, 1], [], []>} : vector<8x16xbf16>, vector<16x32xbf16>, vector<8x32xf32> -> vector<8x32xf32>
    %c8_40 = arith.constant 8 : index
    %c32_41 = arith.constant 32 : index
    %108 = vector.load %arg20[%c8_40, %c32_41] : memref<16x64xf32, #tpu.memory_space<vmem>>, vector<8x32xf32>
    tpu.vector_store %arg20[%c8_40, %c32_41], %107 {strides = array<i32>} : memref<16x64xf32, #tpu.memory_space<vmem>>, vector<8x32xf32>,
    %c0_42 = arith.constant 0 : index
    %c0_43 = arith.constant 0 : index
    %109 = vector.load %arg20[%c0_42, %c0_43] : memref<16x64xf32, #tpu.memory_space<vmem>>, vector<16x64xf32>
    %110 = arith.truncf %109 : vector<16x64xf32> to vector<16x64xbf16>
    %c0_44 = arith.constant 0 : index
    %c0_45 = arith.constant 0 : index
    %111 = vector.load %arg10[%c0_44, %c0_45] : memref<32x64xbf16, #tpu.memory_space<vmem>>, vector<32x64xbf16>
    %cst_46 = arith.constant dense<0.000000e+00> : vector<16x32xf32>
    %112 = tpu.matmul %110, %111, %cst_46 {dimension_numbers = #tpu.dot_dimension_numbers<[1], [1], [0], [0], [0, 0, 1, 0], [], []>} : vector<16x64xbf16>, vector<32x64xbf16>, vector<16x32xf32> -> vector<16x32xf32>
    %c0_47 = arith.constant 0 : index
    %c0_48 = arith.constant 0 : index
    %113 = vector.load %arg11[%c0_47, %c0_48] : memref<1x32xf32, #tpu.memory_space<vmem>>, vector<1x32xf32>
    %114 = vector.broadcast %113 : vector<1x32xf32> to vector<16x32xf32>
    %115 = arith.addf %112, %114 : vector<16x32xf32>
    %c0_49 = arith.constant 0 : index
    %c0_50 = arith.constant 0 : index
    %116 = vector.load %arg0[%c0_49, %c0_50] : memref<32x32xf32, #tpu.memory_space<vmem>>, vector<32x32xf32>
    %117 = arith.truncf %116 : vector<32x32xf32> to vector<32x32xbf16>
    %c0_51 = arith.constant 0 : index
    %c0_52 = arith.constant 0 : index
    %118 = vector.load %arg12[%c0_51, %c0_52] : memref<64x32xbf16, #tpu.memory_space<vmem>>, vector<64x32xbf16>
    %cst_53 = arith.constant dense<0.000000e+00> : vector<32x64xf32>
    %119 = tpu.matmul %117, %118, %cst_53 {dimension_numbers = #tpu.dot_dimension_numbers<[1], [1], [0], [0], [0, 0, 1, 0], [], []>} : vector<32x32xbf16>, vector<64x32xbf16>, vector<32x64xf32> -> vector<32x64xf32>
    %c0_54 = arith.constant 0 : index
    %c0_55 = arith.constant 0 : index
    %120 = vector.load %arg13[%c0_54, %c0_55] : memref<1x64xf32, #tpu.memory_space<vmem>>, vector<1x64xf32>
    %121 = vector.broadcast %120 : vector<1x64xf32> to vector<32x64xf32>
    %122 = arith.addf %119, %121 : vector<32x64xf32>
    %cst_56 = arith.constant 0.176776692 : f32
    %123 = vector.broadcast %cst_56 : f32 to vector<32x64xf32>
    %124 = arith.mulf %122, %123 : vector<32x64xf32>
    %125 = arith.truncf %115 : vector<16x32xf32> to vector<16x32xbf16>
    %c0_57 = arith.constant 0 : index
    %c0_58 = arith.constant 0 : index
    %126 = vector.load %arg14[%c0_57, %c0_58] : memref<128x32xbf16, #tpu.memory_space<vmem>>, vector<128x32xbf16>
    %cst_59 = arith.constant dense<0.000000e+00> : vector<16x128xf32>
    %127 = tpu.matmul %125, %126, %cst_59 {dimension_numbers = #tpu.dot_dimension_numbers<[1], [1], [0], [0], [0, 0, 1, 0], [], []>} : vector<16x32xbf16>, vector<128x32xbf16>, vector<16x128xf32> -> vector<16x128xf32>
    %c0_60 = arith.constant 0 : index
    %c0_61 = arith.constant 0 : index
    %128 = vector.load %arg15[%c0_60, %c0_61] : memref<1x128xf32, #tpu.memory_space<vmem>>, vector<1x128xf32>
    %129 = vector.broadcast %128 : vector<1x128xf32> to vector<16x128xf32>
    %130 = arith.addf %127, %129 : vector<16x128xf32>
    %131 = vector.extract_strided_slice %130 {offsets = [0, 0], sizes = [16, 64], strides = [1, 1]} : vector<16x128xf32> to vector<16x64xf32>
    %132 = vector.extract_strided_slice %130 {offsets = [0, 64], sizes = [16, 64], strides = [1, 1]} : vector<16x128xf32> to vector<16x64xf32>
    %133 = vector.extract_strided_slice %124 {offsets = [0, 0], sizes = [16, 64], strides = [1, 1]} : vector<32x64xf32> to vector<16x64xf32>
    %134 = vector.extract_strided_slice %131 {offsets = [0, 0], sizes = [8, 64], strides = [1, 1]} : vector<16x64xf32> to vector<8x64xf32>
    %135 = vector.extract_strided_slice %132 {offsets = [0, 0], sizes = [8, 64], strides = [1, 1]} : vector<16x64xf32> to vector<8x64xf32>
    %136 = vector.extract_strided_slice %133 {offsets = [0, 0], sizes = [16, 32], strides = [1, 1]} : vector<16x64xf32> to vector<16x32xf32>
    %137 = arith.truncf %136 : vector<16x32xf32> to vector<16x32xbf16>
    %138 = vector.extract_strided_slice %134 {offsets = [0, 0], sizes = [8, 32], strides = [1, 1]} : vector<8x64xf32> to vector<8x32xf32>
    %139 = arith.truncf %138 : vector<8x32xf32> to vector<8x32xbf16>
    %cst_62 = arith.constant dense<0.000000e+00> : vector<16x8xf32>
    %140 = tpu.matmul %137, %139, %cst_62 {dimension_numbers = #tpu.dot_dimension_numbers<[1], [1], [0], [0], [0, 0, 1, 0], [], []>} : vector<16x32xbf16>, vector<8x32xbf16>, vector<16x8xf32> -> vector<16x8xf32>
    %cst_63 = arith.constant dense<0xFF800000> : vector<16xf32>
    %141 = vector.multi_reduction <maximumf>, %140, %cst_63 [1] : vector<16x8xf32> to vector<16xf32>
    %142 = vector.shape_cast %141 : vector<16xf32> to vector<16x1xf32>
    %143 = vector.broadcast %142 : vector<16x1xf32> to vector<16x8xf32>
    %144 = arith.subf %140, %143 : vector<16x8xf32>
    %145 = math.exp %144 : vector<16x8xf32>
    %cst_64 = arith.constant dense<0.000000e+00> : vector<16xf32>
    %146 = vector.multi_reduction <add>, %145, %cst_64 [1] : vector<16x8xf32> to vector<16xf32>
    %147 = vector.shape_cast %146 : vector<16xf32> to vector<16x1xf32>
    %148 = tpu.reciprocal %147 {approx = true} : vector<16x1xf32> -> vector<16x1xf32>
    %149 = vector.broadcast %148 : vector<16x1xf32> to vector<16x8xf32>
    %150 = arith.mulf %145, %149 : vector<16x8xf32>
    %151 = arith.truncf %150 : vector<16x8xf32> to vector<16x8xbf16>
    %152 = vector.extract_strided_slice %135 {offsets = [0, 0], sizes = [8, 32], strides = [1, 1]} : vector<8x64xf32> to vector<8x32xf32>
    %153 = arith.truncf %152 : vector<8x32xf32> to vector<8x32xbf16>
    %cst_65 = arith.constant dense<0.000000e+00> : vector<16x32xf32>
    %154 = tpu.matmul %151, %153, %cst_65 {dimension_numbers = #tpu.dot_dimension_numbers<[1], [0], [0], [1], [0, 0, 1, 1], [], []>} : vector<16x8xbf16>, vector<8x32xbf16>, vector<16x32xf32> -> vector<16x32xf32>
    %c0_66 = arith.constant 0 : index
    %c0_67 = arith.constant 0 : index
    %155 = vector.load %arg21[%c0_66, %c0_67] : memref<32x64xf32, #tpu.memory_space<vmem>>, vector<16x32xf32>
    tpu.vector_store %arg21[%c0_66, %c0_67], %154 {strides = array<i32>} : memref<32x64xf32, #tpu.memory_space<vmem>>, vector<16x32xf32>,
    %156 = vector.extract_strided_slice %133 {offsets = [0, 32], sizes = [16, 32], strides = [1, 1]} : vector<16x64xf32> to vector<16x32xf32>
    %157 = arith.truncf %156 : vector<16x32xf32> to vector<16x32xbf16>
    %158 = vector.extract_strided_slice %134 {offsets = [0, 32], sizes = [8, 32], strides = [1, 1]} : vector<8x64xf32> to vector<8x32xf32>
    %159 = arith.truncf %158 : vector<8x32xf32> to vector<8x32xbf16>
    %cst_68 = arith.constant dense<0.000000e+00> : vector<16x8xf32>
    %160 = tpu.matmul %157, %159, %cst_68 {dimension_numbers = #tpu.dot_dimension_numbers<[1], [1], [0], [0], [0, 0, 1, 0], [], []>} : vector<16x32xbf16>, vector<8x32xbf16>, vector<16x8xf32> -> vector<16x8xf32>
    %cst_69 = arith.constant dense<0xFF800000> : vector<16xf32>
    %161 = vector.multi_reduction <maximumf>, %160, %cst_69 [1] : vector<16x8xf32> to vector<16xf32>
    %162 = vector.shape_cast %161 : vector<16xf32> to vector<16x1xf32>
    %163 = vector.broadcast %162 : vector<16x1xf32> to vector<16x8xf32>
    %164 = arith.subf %160, %163 : vector<16x8xf32>
    %165 = math.exp %164 : vector<16x8xf32>
    %cst_70 = arith.constant dense<0.000000e+00> : vector<16xf32>
    %166 = vector.multi_reduction <add>, %165, %cst_70 [1] : vector<16x8xf32> to vector<16xf32>
    %167 = vector.shape_cast %166 : vector<16xf32> to vector<16x1xf32>
    %168 = tpu.reciprocal %167 {approx = true} : vector<16x1xf32> -> vector<16x1xf32>
    %169 = vector.broadcast %168 : vector<16x1xf32> to vector<16x8xf32>
    %170 = arith.mulf %165, %169 : vector<16x8xf32>
    %171 = arith.truncf %170 : vector<16x8xf32> to vector<16x8xbf16>
    %172 = vector.extract_strided_slice %135 {offsets = [0, 32], sizes = [8, 32], strides = [1, 1]} : vector<8x64xf32> to vector<8x32xf32>
    %173 = arith.truncf %172 : vector<8x32xf32> to vector<8x32xbf16>
    %cst_71 = arith.constant dense<0.000000e+00> : vector<16x32xf32>
    %174 = tpu.matmul %171, %173, %cst_71 {dimension_numbers = #tpu.dot_dimension_numbers<[1], [0], [0], [1], [0, 0, 1, 1], [], []>} : vector<16x8xbf16>, vector<8x32xbf16>, vector<16x32xf32> -> vector<16x32xf32>
    %c0_72 = arith.constant 0 : index
    %c32_73 = arith.constant 32 : index
    %175 = vector.load %arg21[%c0_72, %c32_73] : memref<32x64xf32, #tpu.memory_space<vmem>>, vector<16x32xf32>
    tpu.vector_store %arg21[%c0_72, %c32_73], %174 {strides = array<i32>} : memref<32x64xf32, #tpu.memory_space<vmem>>, vector<16x32xf32>,
    %176 = vector.extract_strided_slice %124 {offsets = [16, 0], sizes = [16, 64], strides = [1, 1]} : vector<32x64xf32> to vector<16x64xf32>
    %177 = vector.extract_strided_slice %131 {offsets = [8, 0], sizes = [8, 64], strides = [1, 1]} : vector<16x64xf32> to vector<8x64xf32>
    %178 = vector.extract_strided_slice %132 {offsets = [8, 0], sizes = [8, 64], strides = [1, 1]} : vector<16x64xf32> to vector<8x64xf32>
    %179 = vector.extract_strided_slice %176 {offsets = [0, 0], sizes = [16, 32], strides = [1, 1]} : vector<16x64xf32> to vector<16x32xf32>
    %180 = arith.truncf %179 : vector<16x32xf32> to vector<16x32xbf16>
    %181 = vector.extract_strided_slice %177 {offsets = [0, 0], sizes = [8, 32], strides = [1, 1]} : vector<8x64xf32> to vector<8x32xf32>
    %182 = arith.truncf %181 : vector<8x32xf32> to vector<8x32xbf16>
    %cst_74 = arith.constant dense<0.000000e+00> : vector<16x8xf32>
    %183 = tpu.matmul %180, %182, %cst_74 {dimension_numbers = #tpu.dot_dimension_numbers<[1], [1], [0], [0], [0, 0, 1, 0], [], []>} : vector<16x32xbf16>, vector<8x32xbf16>, vector<16x8xf32> -> vector<16x8xf32>
    %cst_75 = arith.constant dense<0xFF800000> : vector<16xf32>
    %184 = vector.multi_reduction <maximumf>, %183, %cst_75 [1] : vector<16x8xf32> to vector<16xf32>
    %185 = vector.shape_cast %184 : vector<16xf32> to vector<16x1xf32>
    %186 = vector.broadcast %185 : vector<16x1xf32> to vector<16x8xf32>
    %187 = arith.subf %183, %186 : vector<16x8xf32>
    %188 = math.exp %187 : vector<16x8xf32>
    %cst_76 = arith.constant dense<0.000000e+00> : vector<16xf32>
    %189 = vector.multi_reduction <add>, %188, %cst_76 [1] : vector<16x8xf32> to vector<16xf32>
    %190 = vector.shape_cast %189 : vector<16xf32> to vector<16x1xf32>
    %191 = tpu.reciprocal %190 {approx = true} : vector<16x1xf32> -> vector<16x1xf32>
    %192 = vector.broadcast %191 : vector<16x1xf32> to vector<16x8xf32>
    %193 = arith.mulf %188, %192 : vector<16x8xf32>
    %194 = arith.truncf %193 : vector<16x8xf32> to vector<16x8xbf16>
    %195 = vector.extract_strided_slice %178 {offsets = [0, 0], sizes = [8, 32], strides = [1, 1]} : vector<8x64xf32> to vector<8x32xf32>
    %196 = arith.truncf %195 : vector<8x32xf32> to vector<8x32xbf16>
    %cst_77 = arith.constant dense<0.000000e+00> : vector<16x32xf32>
    %197 = tpu.matmul %194, %196, %cst_77 {dimension_numbers = #tpu.dot_dimension_numbers<[1], [0], [0], [1], [0, 0, 1, 1], [], []>} : vector<16x8xbf16>, vector<8x32xbf16>, vector<16x32xf32> -> vector<16x32xf32>
    %c16 = arith.constant 16 : index
    %c0_78 = arith.constant 0 : index
    %198 = vector.load %arg21[%c16, %c0_78] : memref<32x64xf32, #tpu.memory_space<vmem>>, vector<16x32xf32>
    tpu.vector_store %arg21[%c16, %c0_78], %197 {strides = array<i32>} : memref<32x64xf32, #tpu.memory_space<vmem>>, vector<16x32xf32>,
    %199 = vector.extract_strided_slice %176 {offsets = [0, 32], sizes = [16, 32], strides = [1, 1]} : vector<16x64xf32> to vector<16x32xf32>
    %200 = arith.truncf %199 : vector<16x32xf32> to vector<16x32xbf16>
    %201 = vector.extract_strided_slice %177 {offsets = [0, 32], sizes = [8, 32], strides = [1, 1]} : vector<8x64xf32> to vector<8x32xf32>
    %202 = arith.truncf %201 : vector<8x32xf32> to vector<8x32xbf16>
    %cst_79 = arith.constant dense<0.000000e+00> : vector<16x8xf32>
    %203 = tpu.matmul %200, %202, %cst_79 {dimension_numbers = #tpu.dot_dimension_numbers<[1], [1], [0], [0], [0, 0, 1, 0], [], []>} : vector<16x32xbf16>, vector<8x32xbf16>, vector<16x8xf32> -> vector<16x8xf32>
    %cst_80 = arith.constant dense<0xFF800000> : vector<16xf32>
    %204 = vector.multi_reduction <maximumf>, %203, %cst_80 [1] : vector<16x8xf32> to vector<16xf32>
    %205 = vector.shape_cast %204 : vector<16xf32> to vector<16x1xf32>
    %206 = vector.broadcast %205 : vector<16x1xf32> to vector<16x8xf32>
    %207 = arith.subf %203, %206 : vector<16x8xf32>
    %208 = math.exp %207 : vector<16x8xf32>
    %cst_81 = arith.constant dense<0.000000e+00> : vector<16xf32>
    %209 = vector.multi_reduction <add>, %208, %cst_81 [1] : vector<16x8xf32> to vector<16xf32>
    %210 = vector.shape_cast %209 : vector<16xf32> to vector<16x1xf32>
    %211 = tpu.reciprocal %210 {approx = true} : vector<16x1xf32> -> vector<16x1xf32>
    %212 = vector.broadcast %211 : vector<16x1xf32> to vector<16x8xf32>
    %213 = arith.mulf %208, %212 : vector<16x8xf32>
    %214 = arith.truncf %213 : vector<16x8xf32> to vector<16x8xbf16>
    %215 = vector.extract_strided_slice %178 {offsets = [0, 32], sizes = [8, 32], strides = [1, 1]} : vector<8x64xf32> to vector<8x32xf32>
    %216 = arith.truncf %215 : vector<8x32xf32> to vector<8x32xbf16>
    %cst_82 = arith.constant dense<0.000000e+00> : vector<16x32xf32>
    %217 = tpu.matmul %214, %216, %cst_82 {dimension_numbers = #tpu.dot_dimension_numbers<[1], [0], [0], [1], [0, 0, 1, 1], [], []>} : vector<16x8xbf16>, vector<8x32xbf16>, vector<16x32xf32> -> vector<16x32xf32>
    %c16_83 = arith.constant 16 : index
    %c32_84 = arith.constant 32 : index
    %218 = vector.load %arg21[%c16_83, %c32_84] : memref<32x64xf32, #tpu.memory_space<vmem>>, vector<16x32xf32>
    tpu.vector_store %arg21[%c16_83, %c32_84], %217 {strides = array<i32>} : memref<32x64xf32, #tpu.memory_space<vmem>>, vector<16x32xf32>,
    %c0_85 = arith.constant 0 : index
    %c0_86 = arith.constant 0 : index
    %219 = vector.load %arg21[%c0_85, %c0_86] : memref<32x64xf32, #tpu.memory_space<vmem>>, vector<32x64xf32>
    %220 = arith.truncf %219 : vector<32x64xf32> to vector<32x64xbf16>
    %c0_87 = arith.constant 0 : index
    %c0_88 = arith.constant 0 : index
    %221 = vector.load %arg16[%c0_87, %c0_88] : memref<32x64xbf16, #tpu.memory_space<vmem>>, vector<32x64xbf16>
    %cst_89 = arith.constant dense<0.000000e+00> : vector<32x32xf32>
    %222 = tpu.matmul %220, %221, %cst_89 {dimension_numbers = #tpu.dot_dimension_numbers<[1], [1], [0], [0], [0, 0, 1, 0], [], []>} : vector<32x64xbf16>, vector<32x64xbf16>, vector<32x32xf32> -> vector<32x32xf32>
    %c0_90 = arith.constant 0 : index
    %c0_91 = arith.constant 0 : index
    %223 = vector.load %arg17[%c0_90, %c0_91] : memref<1x32xf32, #tpu.memory_space<vmem>>, vector<1x32xf32>
    %224 = vector.broadcast %223 : vector<1x32xf32> to vector<32x32xf32>
    %225 = arith.addf %222, %224 : vector<32x32xf32>
    %c0_92 = arith.constant 0 : index
    %c0_93 = arith.constant 0 : index
    %226 = vector.load %arg19[%c0_92, %c0_93] : memref<16x32xf32, #tpu.memory_space<vmem>>, vector<16x32xf32>
    tpu.vector_store %arg19[%c0_92, %c0_93], %115 {strides = array<i32>} : memref<16x32xf32, #tpu.memory_space<vmem>>, vector<16x32xf32>,
    %c0_94 = arith.constant 0 : index
    %c0_95 = arith.constant 0 : index
    %227 = vector.load %arg18[%c0_94, %c0_95] : memref<32x32xf32, #tpu.memory_space<vmem>>, vector<32x32xf32>
    tpu.vector_store %arg18[%c0_94, %c0_95], %225 {strides = array<i32>} : memref<32x32xf32, #tpu.memory_space<vmem>>, vector<32x32xf32>,
    return
  }
}

</mosaic_0001>

<llo_original>
// kernel: luna_forward.1
$region0: #{luna_forward.1}
  #allocation0 [shape = 'u32[]', space=smem, size = 0x4, offset = 0x4, fixed_abs, tag = 'smem constant byte address 0x4 - core index']
  #allocation1 [shape = 'u32[72,128]{1,0:T(1,128)}', space=vmem, size = 0x9000, scoped, tag = 'internal scratch']
  #allocation2 [shape = 'f32[16,64]{1,0:T(8,128)}', space=vmem, size = 0x2000, scoped, tag = 'scratch operand']
  #allocation3 [shape = 'f32[32,64]{1,0:T(8,128)}', space=vmem, size = 0x4000, scoped, tag = 'scratch operand']
  %s0 = inlined_call_operand.vmem [shape: f32[32,32], index: 0, kind: input, shape index: {}]
  %s1 = inlined_call_operand.vmem [shape: f32[32,32], index: 1, kind: input, shape index: {}]
  %s2 = inlined_call_operand.vmem [shape: f32[32,32], index: 2, kind: input, shape index: {}]
  %s3 = inlined_call_operand.vmem [shape: f32[16,32], index: 3, kind: input, shape index: {}]
  %s4 = inlined_call_operand.vmem [shape: bf16[64,32], index: 4, kind: input, shape index: {}]
  %s5 = inlined_call_operand.vmem [shape: f32[1,64], index: 5, kind: input, shape index: {}]
  %s6 = inlined_call_operand.vmem [shape: bf16[64,32], index: 6, kind: input, shape index: {}]
  %s7 = inlined_call_operand.vmem [shape: f32[1,64], index: 7, kind: input, shape index: {}]
  %s8 = inlined_call_operand.vmem [shape: bf16[64,32], index: 8, kind: input, shape index: {}]
  %s9 = inlined_call_operand.vmem [shape: f32[1,64], index: 9, kind: input, shape index: {}]
  %s10 = inlined_call_operand.vmem [shape: bf16[32,64], index: 10, kind: input, shape index: {}]
  %s11 = inlined_call_operand.vmem [shape: f32[1,32], index: 11, kind: input, shape index: {}]
  %s12 = inlined_call_operand.vmem [shape: bf16[64,32], index: 12, kind: input, shape index: {}]
  %s13 = inlined_call_operand.vmem [shape: f32[1,64], index: 13, kind: input, shape index: {}]
  %s14 = inlined_call_operand.vmem [shape: bf16[128,32], index: 14, kind: input, shape index: {}]
  %s15 = inlined_call_operand.vmem [shape: f32[1,128], index: 15, kind: input, shape index: {}]
  %s16 = inlined_call_operand.vmem [shape: bf16[32,64], index: 16, kind: input, shape index: {}]
  %s17 = inlined_call_operand.vmem [shape: f32[1,32], index: 17, kind: input, shape index: {}]
  %s18 = inlined_call_operand.hbm [shape: f32[32,32], index: 18, kind: output, shape index: {0}]
  %s19 = inlined_call_operand.hbm [shape: f32[16,32], index: 19, kind: output, shape index: {1}]
  %20 = xla_tuple %s18, %s19
  %s21 = sld [smem:[#allocation0]]
  $region90: #{luna_forward.1} parent=0
    _
  %s23 = ssub.s32 1, %s21
  %s24 = scalar_select 0, %s23, %s21
  $region1: #{luna_forward.1} parent=0
    #allocation4 [shape = 'u8[16384]{0}', space=vmem, size = 0x4000, scoped, tag = 'output window, operand 0, single buffered']
    #allocation5 [shape = 's32[1]{0}', space=sflag, size = 0x4, scoped, tag = 'scoped memory for luna_forward.1']
    #allocation6 [shape = 'u8[8192]{0}', space=vmem, size = 0x2000, scoped, tag = 'output window, operand 1, single buffered']
    #allocation7 [shape = 's32[1]{0}', space=sflag, size = 0x4, scoped, tag = 'scoped memory for luna_forward.1']
    %25 = vsyncpa [#allocation5], 0
    %26 = vsyncpa [#allocation7], 0
    // Predicated region
    $region2: #{luna_forward.1} parent=1 // pred_check
      _
    $region3: #{luna_forward.1} parent=1 // pred_check_branch
      %28 = sbr.rel (0) target = $region5
    $region4: #{luna_forward.1} parent=1 // pred_region
      _
    $region5: #{luna_forward.1} parent=1 // pred_fallthru
      _
    // Predicated region
    $region6: #{luna_forward.1} parent=1 // pred_check
      _
    $region7: #{luna_forward.1} parent=1 // pred_check_branch
      %30 = sbr.rel (0) target = $region9
    $region8: #{luna_forward.1} parent=1 // pred_region
      _
    $region9: #{luna_forward.1} parent=1 // pred_fallthru
      _
    // Predicated region
    $region10: #{luna_forward.1} parent=1 // pred_check
      _
    $region11: #{luna_forward.1} parent=1 // pred_check_branch
      %32 = sbr.rel (0) target = $region13
    $region12: #{luna_forward.1} parent=1 // pred_region
      _
    $region13: #{luna_forward.1} parent=1 // pred_fallthru
      _
    // Predicated region
    $region14: #{luna_forward.1} parent=1 // pred_check
      _
    $region15: #{luna_forward.1} parent=1 // pred_check_branch
      %34 = sbr.rel (0) target = $region17
    $region16: #{luna_forward.1} parent=1 // pred_region
      _
    $region17: #{luna_forward.1} parent=1 // pred_fallthru
      _
    // Predicated region
    $region18: #{luna_forward.1} parent=1 // pred_check
      _
    $region19: #{luna_forward.1} parent=1 // pred_check_branch
      %36 = sbr.rel (0) target = $region21
    $region20: #{luna_forward.1} parent=1 // pred_region
      _
    $region21: #{luna_forward.1} parent=1 // pred_fallthru
      _
    // Predicated region
    $region22: #{luna_forward.1} parent=1 // pred_check
      _
    $region23: #{luna_forward.1} parent=1 // pred_check_branch
      %38 = sbr.rel (0) target = $region25
    $region24: #{luna_forward.1} parent=1 // pred_region
      _
    $region25: #{luna_forward.1} parent=1 // pred_fallthru
      _
    // Predicated region
    $region26: #{luna_forward.1} parent=1 // pred_check
      _
    $region27: #{luna_forward.1} parent=1 // pred_check_branch
      %40 = sbr.rel (0) target = $region29
    $region28: #{luna_forward.1} parent=1 // pred_region
      _
    $region29: #{luna_forward.1} parent=1 // pred_fallthru
      _
    // Predicated region
    $region30: #{luna_forward.1} parent=1 // pred_check
      _
    $region31: #{luna_forward.1} parent=1 // pred_check_branch
      %42 = sbr.rel (0) target = $region33
    $region32: #{luna_forward.1} parent=1 // pred_region
      _
    $region33: #{luna_forward.1} parent=1 // pred_fallthru
      _
    // Predicated region
    $region34: #{luna_forward.1} parent=1 // pred_check
      _
    $region35: #{luna_forward.1} parent=1 // pred_check_branch
      %44 = sbr.rel (0) target = $region37
    $region36: #{luna_forward.1} parent=1 // pred_region
      _
    $region37: #{luna_forward.1} parent=1 // pred_fallthru
      _
    // Predicated region
    $region38: #{luna_forward.1} parent=1 // pred_check
      _
    $region39: #{luna_forward.1} parent=1 // pred_check_branch
      %46 = sbr.rel (0) target = $region41
    $region40: #{luna_forward.1} parent=1 // pred_region
      _
    $region41: #{luna_forward.1} parent=1 // pred_fallthru
      _
    // Predicated region
    $region42: #{luna_forward.1} parent=1 // pred_check
      _
    $region43: #{luna_forward.1} parent=1 // pred_check_branch
      %48 = sbr.rel (0) target = $region45
    $region44: #{luna_forward.1} parent=1 // pred_region
      _
    $region45: #{luna_forward.1} parent=1 // pred_fallthru
      _
    // Predicated region
    $region46: #{luna_forward.1} parent=1 // pred_check
      _
    $region47: #{luna_forward.1} parent=1 // pred_check_branch
      %50 = sbr.rel (0) target = $region49
    $region48: #{luna_forward.1} parent=1 // pred_region
      _
    $region49: #{luna_forward.1} parent=1 // pred_fallthru
      _
    // Predicated region
    $region50: #{luna_forward.1} parent=1 // pred_check
      _
    $region51: #{luna_forward.1} parent=1 // pred_check_branch
      %52 = sbr.rel (0) target = $region53
    $region52: #{luna_forward.1} parent=1 // pred_region
      _
    $region53: #{luna_forward.1} parent=1 // pred_fallthru
      _
    // Predicated region
    $region54: #{luna_forward.1} parent=1 // pred_check
      _
    $region55: #{luna_forward.1} parent=1 // pred_check_branch
      %54 = sbr.rel (0) target = $region57
    $region56: #{luna_forward.1} parent=1 // pred_region
      _
    $region57: #{luna_forward.1} parent=1 // pred_fallthru
      _
    // Predicated region
    $region58: #{luna_forward.1} parent=1 // pred_check
      _
    $region59: #{luna_forward.1} parent=1 // pred_check_branch
      %56 = sbr.rel (0) target = $region61
    $region60: #{luna_forward.1} parent=1 // pred_region
      _
    $region61: #{luna_forward.1} parent=1 // pred_fallthru
      _
    // Predicated region
    $region62: #{luna_forward.1} parent=1 // pred_check
      _
    $region63: #{luna_forward.1} parent=1 // pred_check_branch
      %58 = sbr.rel (0) target = $region65
    $region64: #{luna_forward.1} parent=1 // pred_region
      _
    $region65: #{luna_forward.1} parent=1 // pred_fallthru
      _
    // Predicated region
    $region66: #{luna_forward.1} parent=1 // pred_check
      _
    $region67: #{luna_forward.1} parent=1 // pred_check_branch
      %60 = sbr.rel (0) target = $region69
    $region68: #{luna_forward.1} parent=1 // pred_region
      _
    $region69: #{luna_forward.1} parent=1 // pred_fallthru
      _
    // Predicated region
    $region70: #{luna_forward.1} parent=1 // pred_check
      _
    $region71: #{luna_forward.1} parent=1 // pred_check_branch
      %62 = sbr.rel (0) target = $region73
    $region72: #{luna_forward.1} parent=1 // pred_region
      _
    $region73: #{luna_forward.1} parent=1 // pred_fallthru
      _
    %v64 = vld [vmem:[%s3] sm:$0xff]
    %v65 = vld [vmem:[%s3 + $0x8] sm:$0xff]
    %v66 = vpack.c.bf16 %v65, %v64
    %v67 = vld [vmem:[%s4] sm:$0xf]
    %v68 = vld [vmem:[%s4 + $0x4] sm:$0xf]
    %v69 = vld [vmem:[%s4 + $0x8] sm:$0xf]
    %v70 = vld [vmem:[%s4 + $0xc] sm:$0xf]
    %v71 = vld [vmem:[%s4 + $0x10] sm:$0xf]
    %v72 = vld [vmem:[%s4 + $0x14] sm:$0xf]
    %v73 = vld [vmem:[%s4 + $0x18] sm:$0xf]
    %v74 = vld [vmem:[%s4 + $0x1c] sm:$0xf]
    %v75 = vld [vmem:[%s5] sm:$0x1]
    %v77 = vperm.slane %v75, 0
    %v87 = vunpack.c.l.b16 %v67
    %v88 = vunpack.c.l.b16 %v68
    %v89 = vunpack.c.l.b16 %v69
    %v90 = vunpack.c.l.b16 %v70
    %v91 = vunpack.c.l.b16 %v71
    %v92 = vunpack.c.l.b16 %v72
    %v93 = vunpack.c.l.b16 %v73
    %v94 = vunpack.c.l.b16 %v74
    %v95 = vpack.c.b16 %v88, %v87
    %v96 = vpack.c.b16 %v90, %v89
    %v97 = vpack.c.b16 %v92, %v91
    %v98 = vpack.c.b16 %v94, %v93
    %vm99 = vcmask 261120
    %v101 = vsel %vm99, %v66, 0
    %v104 = vsel %vm99, %v95, 0
    %v107 = vsel %vm99, %v96, 0
    %v110 = vsel %vm99, %v97, 0
    %v113 = vsel %vm99, %v98, 0
    %115 = vmatpush.bf16.xpose.msra.mxu0 0
    %116 = vmatpush.bf16.xpose.msra.mxu0 0
    %117 = vmatpush.bf16.xpose.msra.mxu0 0
    %118 = vmatpush.bf16.xpose.msra.mxu0 0
    %119 = vmatpush.bf16.xpose.msra.mxu0 %v113
    %120 = vmatpush.bf16.xpose.msra.mxu0 %v110
    %121 = vmatpush.bf16.xpose.msra.mxu0 %v107
    %122 = vmatpush.bf16.xpose.msra.mxu0 %v104
    %123 = vmatmul.bf16.gmra.mxu0 %v101
    %v124 = vpop.f32.mrf.mxu0
    %v125 = vadd.f32 %v77, %v124
    %v126 = vpop.f32.mrf.mxu0
    %v127 = vadd.f32 %v77, %v126
    %128 = vdwg.mxu0
    %v129 = vmul.f32 %v125, 0.17677669
    %v130 = vmul.f32 %v127, 0.17677669
    %v131 = vld [vmem:[%s1] sm:$0xff]
    %v132 = vld [vmem:[%s1 + $0x8] sm:$0xff]
    %v133 = vld [vmem:[%s1 + $0x10] sm:$0xff]
    %v134 = vld [vmem:[%s1 + $0x18] sm:$0xff]
    %v135 = vpack.c.bf16 %v132, %v131
    %v136 = vpack.c.bf16 %v134, %v133
    %v137 = vld [vmem:[%s6] sm:$0xf]
    %v138 = vld [vmem:[%s6 + $0x4] sm:$0xf]
    %v139 = vld [vmem:[%s6 + $0x8] sm:$0xf]
    %v140 = vld [vmem:[%s6 + $0xc] sm:$0xf]
    %v141 = vld [vmem:[%s6 + $0x10] sm:$0xf]
    %v142 = vld [vmem:[%s6 + $0x14] sm:$0xf]
    %v143 = vld [vmem:[%s6 + $0x18] sm:$0xf]
    %v144 = vld [vmem:[%s6 + $0x1c] sm:$0xf]
    %v145 = vld [vmem:[%s7] sm:$0x1]
    %v147 = vperm.slane %v145, 0
    %v157 = vunpack.c.l.b16 %v137
    %v158 = vunpack.c.l.b16 %v138
    %v159 = vunpack.c.l.b16 %v139
    %v160 = vunpack.c.l.b16 %v140
    %v161 = vunpack.c.l.b16 %v141
    %v162 = vunpack.c.l.b16 %v142
    %v163 = vunpack.c.l.b16 %v143
    %v164 = vunpack.c.l.b16 %v144
    %v165 = vpack.c.b16 %v158, %v157
    %v166 = vpack.c.b16 %v160, %v159
    %v167 = vpack.c.b16 %v162, %v161
    %v168 = vpack.c.b16 %v164, %v163
    %v170 = vsel %vm99, %v135, 0
    %v173 = vsel %vm99, %v136, 0
    %v176 = vsel %vm99, %v165, 0
    %v179 = vsel %vm99, %v166, 0
    %v182 = vsel %vm99, %v167, 0
    %v185 = vsel %vm99, %v168, 0
    %187 = vmatpush.bf16.xpose.msra.mxu0 0
    %188 = vmatpush.bf16.xpose.msra.mxu0 0
    %189 = vmatpush.bf16.xpose.msra.mxu0 0
    %190 = vmatpush.bf16.xpose.msra.mxu0 0
    %191 = vmatpush.bf16.xpose.msra.mxu0 %v185
    %192 = vmatpush.bf16.xpose.msra.mxu0 %v182
    %193 = vmatpush.bf16.xpose.msra.mxu0 %v179
    %194 = vmatpush.bf16.xpose.msra.mxu0 %v176
    %195 = vmatmul.bf16.gmra.mxu0 %v170
    %v196 = vpop.f32.mrf.mxu0
    %v197 = vadd.f32 %v147, %v196
    %v198 = vpop.f32.mrf.mxu0
    %v199 = vadd.f32 %v147, %v198
    %200 = vmatmul.bf16.gmra.mxu0 %v173
    %v201 = vpop.f32.mrf.mxu0
    %v202 = vadd.f32 %v147, %v201
    %v203 = vpop.f32.mrf.mxu0
    %v204 = vadd.f32 %v147, %v203
    %205 = vdwg.mxu0
    %v206 = vld [vmem:[%s2] sm:$0xff]
    %v207 = vld [vmem:[%s2 + $0x8] sm:$0xff]
    %v208 = vld [vmem:[%s2 + $0x10] sm:$0xff]
    %v209 = vld [vmem:[%s2 + $0x18] sm:$0xff]
    %v210 = vpack.c.bf16 %v207, %v206
    %v211 = vpack.c.bf16 %v209, %v208
    %v212 = vld [vmem:[%s8] sm:$0xf]
    %v213 = vld [vmem:[%s8 + $0x4] sm:$0xf]
    %v214 = vld [vmem:[%s8 + $0x8] sm:$0xf]
    %v215 = vld [vmem:[%s8 + $0xc] sm:$0xf]
    %v216 = vld [vmem:[%s8 + $0x10] sm:$0xf]
    %v217 = vld [vmem:[%s8 + $0x14] sm:$0xf]
    %v218 = vld [vmem:[%s8 + $0x18] sm:$0xf]
    %v219 = vld [vmem:[%s8 + $0x1c] sm:$0xf]
    %v220 = vld [vmem:[%s9] sm:$0x1]
    %v222 = vperm.slane %v220, 0
    %v232 = vunpack.c.l.b16 %v212
    %v233 = vunpack.c.l.b16 %v213
    %v234 = vunpack.c.l.b16 %v214
    %v235 = vunpack.c.l.b16 %v215
    %v236 = vunpack.c.l.b16 %v216
    %v237 = vunpack.c.l.b16 %v217
    %v238 = vunpack.c.l.b16 %v218
    %v239 = vunpack.c.l.b16 %v219
    %v240 = vpack.c.b16 %v233, %v232
    %v241 = vpack.c.b16 %v235, %v234
    %v242 = vpack.c.b16 %v237, %v236
    %v243 = vpack.c.b16 %v239, %v238
    %v245 = vsel %vm99, %v210, 0
    %v248 = vsel %vm99, %v211, 0
    %v251 = vsel %vm99, %v240, 0
    %v254 = vsel %vm99, %v241, 0
    %v257 = vsel %vm99, %v242, 0
    %v260 = vsel %vm99, %v243, 0
    %262 = vmatpush.bf16.xpose.msra.mxu0 0
    %263 = vmatpush.bf16.xpose.msra.mxu0 0
    %264 = vmatpush.bf16.xpose.msra.mxu0 0
    %265 = vmatpush.bf16.xpose.msra.mxu0 0
    %266 = vmatpush.bf16.xpose.msra.mxu0 %v260
    %267 = vmatpush.bf16.xpose.msra.mxu0 %v257
    %268 = vmatpush.bf16.xpose.msra.mxu0 %v254
    %269 = vmatpush.bf16.xpose.msra.mxu0 %v251
    %270 = vmatmul.bf16.gmra.mxu0 %v245
    %v271 = vpop.f32.mrf.mxu0
    %v272 = vadd.f32 %v222, %v271
    %v273 = vpop.f32.mrf.mxu0
    %v274 = vadd.f32 %v222, %v273
    %275 = vmatmul.bf16.gmra.mxu0 %v248
    %v276 = vpop.f32.mrf.mxu0
    %v277 = vadd.f32 %v222, %v276
    %v278 = vpop.f32.mrf.mxu0
    %v279 = vadd.f32 %v222, %v278
    %280 = vdwg.mxu0
    %v281 = vpack.c.bf16 %v129, %v129
    %v282 = vpack.c.bf16 %v199, %v197
    %v284 = vsel %vm99, %v281, 0
    %v287 = vsel %vm99, %v282, 0
    %289 = vmatpush.bf16.xpose.msra.mxu0 0
    %290 = vmatpush.bf16.xpose.msra.mxu0 0
    %291 = vmatpush.bf16.xpose.msra.mxu0 0
    %292 = vmatpush.bf16.xpose.msra.mxu0 0
    %293 = vmatpush.bf16.xpose.msra.mxu0 0
    %294 = vmatpush.bf16.xpose.msra.mxu0 0
    %295 = vmatpush.bf16.xpose.msra.mxu0 0
    %296 = vmatpush.bf16.xpose.msra.mxu0 %v287
    %297 = vmatmul.bf16.gmra.mxu0 %v284
    %v298 = vpop.f32.mrf.mxu0
    %v299 = vadd.f32 0.0, %v298
    %v300 = vpop.f32.mrf.mxu0
    %301 = vdwg.mxu0
    %vm302 = vcmask 130048
    %v303 = vsel %vm302, %v299, -inf
    %304 = vmax.xlane.f32.xlu0 %v303
    %v305 = vpop.xlane.xlu0 %304
    %v306 = vsub.f32 %v299, %v305
    %v307 = vmul.f32 %v306, 1.442695
    %v308 = vpow.pop %v307
    %v309 = vsel %vm302, %v308, 0.0
    %310 = vadd.xlane.f32.xlu0 %v309
    %v311 = vpop.xlane.xlu0 %310
    %v312 = vrcp.pop %v311
    %v313 = vmul.f32 %v308, %v312
    %v314 = vpack.c.bf16 %v313, %v313
    %v315 = vpack.c.bf16 %v274, %v272
    %v317 = vsel %vm302, %v314, 0
    %319 = vmatpush.bf16.msra.mxu0 0
    %320 = vmatpush.bf16.msra.mxu0 0
    %321 = vmatpush.bf16.msra.mxu0 0
    %322 = vmatpush.bf16.msra.mxu0 0
    %323 = vmatpush.bf16.msra.mxu0 0
    %324 = vmatpush.bf16.msra.mxu0 0
    %325 = vmatpush.bf16.msra.mxu0 0
    %326 = vmatpush.bf16.msra.mxu0 %v315
    %327 = vmatmul.bf16.gmra.mxu0 %v317
    %v328 = vpop.f32.mrf.mxu0
    %v329 = vadd.f32 0.0, %v328
    %v330 = vpop.f32.mrf.mxu0
    %331 = vdwg.mxu0
    %332 = vst.msk [vmem:[#allocation2] sm:$0xff] %vm99, %v329
    %334 = vrot.lane.b32.xlu0 %v281, 96
    %v335 = vpop.permute.xlu0 %334
    %337 = vrot.lane.b32.xlu0 %v282, 96
    %v338 = vpop.permute.xlu0 %337
    %v340 = vsel %vm99, %v335, 0
    %v343 = vsel %vm99, %v338, 0
    %345 = vmatpush.bf16.xpose.msra.mxu0 0
    %346 = vmatpush.bf16.xpose.msra.mxu0 0
    %347 = vmatpush.bf16.xpose.msra.mxu0 0
    %348 = vmatpush.bf16.xpose.msra.mxu0 0
    %349 = vmatpush.bf16.xpose.msra.mxu0 0
    %350 = vmatpush.bf16.xpose.msra.mxu0 0
    %351 = vmatpush.bf16.xpose.msra.mxu0 0
    %352 = vmatpush.bf16.xpose.msra.mxu0 %v343
    %353 = vmatmul.bf16.gmra.mxu0 %v340
    %v354 = vpop.f32.mrf.mxu0
    %v355 = vadd.f32 0.0, %v354
    %v356 = vpop.f32.mrf.mxu0
    %357 = vdwg.mxu0
    %v358 = vsel %vm302, %v355, -inf
    %359 = vmax.xlane.f32.xlu0 %v358
    %v360 = vpop.xlane.xlu0 %359
    %v361 = vsub.f32 %v355, %v360
    %v362 = vmul.f32 %v361, 1.442695
    %v363 = vpow.pop %v362
    %v364 = vsel %vm302, %v363, 0.0
    %365 = vadd.xlane.f32.xlu0 %v364
    %v366 = vpop.xlane.xlu0 %365
    %v367 = vrcp.pop %v366
    %v368 = vmul.f32 %v363, %v367
    %v369 = vpack.c.bf16 %v368, %v368
    %371 = vrot.lane.b32.xlu0 %v315, 96
    %v372 = vpop.permute.xlu0 %371
    %v375 = vsel %vm302, %v369, 0
    %377 = vmatpush.bf16.msra.mxu0 0
    %378 = vmatpush.bf16.msra.mxu0 0
    %379 = vmatpush.bf16.msra.mxu0 0
    %380 = vmatpush.bf16.msra.mxu0 0
    %381 = vmatpush.bf16.msra.mxu0 0
    %382 = vmatpush.bf16.msra.mxu0 0
    %383 = vmatpush.bf16.msra.mxu0 0
    %384 = vmatpush.bf16.msra.mxu0 %v372
    %385 = vmatmul.bf16.gmra.mxu0 %v375
    %v386 = vpop.f32.mrf.mxu0
    %v387 = vadd.f32 0.0, %v386
    %v388 = vpop.f32.mrf.mxu0
    %389 = vdwg.mxu0
    %391 = vrot.lane.b32.xlu0 %v387, 32
    %v392 = vpop.permute.xlu0 %391
    %vm394 = vcmask 523520
    %395 = vst.msk [vmem:[#allocation2] sm:$0xff] %vm394, %v392
    %v396 = vpack.c.bf16 %v130, %v130
    %v397 = vpack.c.bf16 %v204, %v202
    %v399 = vsel %vm99, %v396, 0
    %v402 = vsel %vm99, %v397, 0
    %404 = vmatpush.bf16.xpose.msra.mxu0 0
    %405 = vmatpush.bf16.xpose.msra.mxu0 0
    %406 = vmatpush.bf16.xpose.msra.mxu0 0
    %407 = vmatpush.bf16.xpose.msra.mxu0 0
    %408 = vmatpush.bf16.xpose.msra.mxu0 0
    %409 = vmatpush.bf16.xpose.msra.mxu0 0
    %410 = vmatpush.bf16.xpose.msra.mxu0 0
    %411 = vmatpush.bf16.xpose.msra.mxu0 %v402
    %412 = vmatmul.bf16.gmra.mxu0 %v399
    %v413 = vpop.f32.mrf.mxu0
    %v414 = vadd.f32 0.0, %v413
    %v415 = vpop.f32.mrf.mxu0
    %416 = vdwg.mxu0
    %v417 = vsel %vm302, %v414, -inf
    %418 = vmax.xlane.f32.xlu0 %v417
    %v419 = vpop.xlane.xlu0 %418
    %v420 = vsub.f32 %v414, %v419
    %v421 = vmul.f32 %v420, 1.442695
    %v422 = vpow.pop %v421
    %v423 = vsel %vm302, %v422, 0.0
    %424 = vadd.xlane.f32.xlu0 %v423
    %v425 = vpop.xlane.xlu0 %424
    %v426 = vrcp.pop %v425
    %v427 = vmul.f32 %v422, %v426
    %v428 = vpack.c.bf16 %v427, %v427
    %v429 = vpack.c.bf16 %v279, %v277
    %v431 = vsel %vm302, %v428, 0
    %433 = vmatpush.bf16.msra.mxu0 0
    %434 = vmatpush.bf16.msra.mxu0 0
    %435 = vmatpush.bf16.msra.mxu0 0
    %436 = vmatpush.bf16.msra.mxu0 0
    %437 = vmatpush.bf16.msra.mxu0 0
    %438 = vmatpush.bf16.msra.mxu0 0
    %439 = vmatpush.bf16.msra.mxu0 0
    %440 = vmatpush.bf16.msra.mxu0 %v429
    %441 = vmatmul.bf16.gmra.mxu0 %v431
    %v442 = vpop.f32.mrf.mxu0
    %v443 = vadd.f32 0.0, %v442
    %v444 = vpop.f32.mrf.mxu0
    %445 = vdwg.mxu0
    %446 = vst.msk [vmem:[#allocation2 + $0x8] sm:$0xff] %vm99, %v443
    %448 = vrot.lane.b32.xlu0 %v396, 96
    %v449 = vpop.permute.xlu0 %448
    %451 = vrot.lane.b32.xlu0 %v397, 96
    %v452 = vpop.permute.xlu0 %451
    %v454 = vsel %vm99, %v449, 0
    %v457 = vsel %vm99, %v452, 0
    %459 = vmatpush.bf16.xpose.msra.mxu0 0
    %460 = vmatpush.bf16.xpose.msra.mxu0 0
    %461 = vmatpush.bf16.xpose.msra.mxu0 0
    %462 = vmatpush.bf16.xpose.msra.mxu0 0
    %463 = vmatpush.bf16.xpose.msra.mxu0 0
    %464 = vmatpush.bf16.xpose.msra.mxu0 0
    %465 = vmatpush.bf16.xpose.msra.mxu0 0
    %466 = vmatpush.bf16.xpose.msra.mxu0 %v457
    %467 = vmatmul.bf16.gmra.mxu0 %v454
    %v468 = vpop.f32.mrf.mxu0
    %v469 = vadd.f32 0.0, %v468
    %v470 = vpop.f32.mrf.mxu0
    %471 = vdwg.mxu0
    %v472 = vsel %vm302, %v469, -inf
    %473 = vmax.xlane.f32.xlu0 %v472
    %v474 = vpop.xlane.xlu0 %473
    %v475 = vsub.f32 %v469, %v474
    %v476 = vmul.f32 %v475, 1.442695
    %v477 = vpow.pop %v476
    %v478 = vsel %vm302, %v477, 0.0
    %479 = vadd.xlane.f32.xlu0 %v478
    %v480 = vpop.xlane.xlu0 %479
    %v481 = vrcp.pop %v480
    %v482 = vmul.f32 %v477, %v481
    %v483 = vpack.c.bf16 %v482, %v482
    %485 = vrot.lane.b32.xlu0 %v429, 96
    %v486 = vpop.permute.xlu0 %485
    %v489 = vsel %vm302, %v483, 0
    %491 = vmatpush.bf16.msra.mxu0 0
    %492 = vmatpush.bf16.msra.mxu0 0
    %493 = vmatpush.bf16.msra.mxu0 0
    %494 = vmatpush.bf16.msra.mxu0 0
    %495 = vmatpush.bf16.msra.mxu0 0
    %496 = vmatpush.bf16.msra.mxu0 0
    %497 = vmatpush.bf16.msra.mxu0 0
    %498 = vmatpush.bf16.msra.mxu0 %v486
    %499 = vmatmul.bf16.gmra.mxu0 %v489
    %v500 = vpop.f32.mrf.mxu0
    %v501 = vadd.f32 0.0, %v500
    %v502 = vpop.f32.mrf.mxu0
    %503 = vdwg.mxu0
    %505 = vrot.lane.b32.xlu0 %v501, 32
    %v506 = vpop.permute.xlu0 %505
    %508 = vst.msk [vmem:[#allocation2 + $0x8] sm:$0xff] %vm394, %v506
    %v509 = vld [vmem:[#allocation2] sm:$0xff]
    %v510 = vld [vmem:[#allocation2 + $0x8] sm:$0xff]
    %v511 = vpack.c.bf16 %v510, %v509
    %v512 = vld [vmem:[%s10] sm:$0xf]
    %v513 = vld [vmem:[%s10 + $0x4] sm:$0xf]
    %v514 = vld [vmem:[%s10 + $0x8] sm:$0xf]
    %v515 = vld [vmem:[%s10 + $0xc] sm:$0xf]
    %v516 = vld [vmem:[%s11] sm:$0x1]
    %v518 = vperm.slane %v516, 0
    %v524 = vunpack.c.l.b16 %v512
    %v525 = vunpack.c.l.b16 %v513
    %v526 = vunpack.c.l.b16 %v514
    %v527 = vunpack.c.l.b16 %v515
    %v528 = vpack.c.b16 %v525, %v524
    %v529 = vpack.c.b16 %v527, %v526
    %vm530 = vcmask 523264
    %v532 = vsel %vm530, %v511, 0
    %v535 = vsel %vm530, %v528, 0
    %v538 = vsel %vm530, %v529, 0
    %540 = vmatpush.bf16.xpose.msra.mxu0 0
    %541 = vmatpush.bf16.xpose.msra.mxu0 0
    %542 = vmatpush.bf16.xpose.msra.mxu0 0
    %543 = vmatpush.bf16.xpose.msra.mxu0 0
    %544 = vmatpush.bf16.xpose.msra.mxu0 0
    %545 = vmatpush.bf16.xpose.msra.mxu0 0
    %546 = vmatpush.bf16.xpose.msra.mxu0 %v538
    %547 = vmatpush.bf16.xpose.msra.mxu0 %v535
    %548 = vmatmul.bf16.gmra.mxu0 %v532
    %v549 = vpop.f32.mrf.mxu0
    %v550 = vadd.f32 %v518, %v549
    %v551 = vpop.f32.mrf.mxu0
    %v552 = vadd.f32 %v518, %v551
    %553 = vdwg.mxu0
    %v554 = vld [vmem:[%s0] sm:$0xff]
    %v555 = vld [vmem:[%s0 + $0x8] sm:$0xff]
    %v556 = vld [vmem:[%s0 + $0x10] sm:$0xff]
    %v557 = vld [vmem:[%s0 + $0x18] sm:$0xff]
    %v558 = vpack.c.bf16 %v555, %v554
    %v559 = vpack.c.bf16 %v557, %v556
    %v560 = vld [vmem:[%s12] sm:$0xf]
    %v561 = vld [vmem:[%s12 + $0x4] sm:$0xf]
    %v562 = vld [vmem:[%s12 + $0x8] sm:$0xf]
    %v563 = vld [vmem:[%s12 + $0xc] sm:$0xf]
    %v564 = vld [vmem:[%s12 + $0x10] sm:$0xf]
    %v565 = vld [vmem:[%s12 + $0x14] sm:$0xf]
    %v566 = vld [vmem:[%s12 + $0x18] sm:$0xf]
    %v567 = vld [vmem:[%s12 + $0x1c] sm:$0xf]
    %v568 = vld [vmem:[%s13] sm:$0x1]
    %v570 = vperm.slane %v568, 0
    %v580 = vunpack.c.l.b16 %v560
    %v581 = vunpack.c.l.b16 %v561
    %v582 = vunpack.c.l.b16 %v562
    %v583 = vunpack.c.l.b16 %v563
    %v584 = vunpack.c.l.b16 %v564
    %v585 = vunpack.c.l.b16 %v565
    %v586 = vunpack.c.l.b16 %v566
    %v587 = vunpack.c.l.b16 %v567
    %v588 = vpack.c.b16 %v581, %v580
    %v589 = vpack.c.b16 %v583, %v582
    %v590 = vpack.c.b16 %v585, %v584
    %v591 = vpack.c.b16 %v587, %v586
    %v593 = vsel %vm99, %v558, 0
    %v596 = vsel %vm99, %v559, 0
    %v599 = vsel %vm99, %v588, 0
    %v602 = vsel %vm99, %v589, 0
    %v605 = vsel %vm99, %v590, 0
    %v608 = vsel %vm99, %v591, 0
    %610 = vmatpush.bf16.xpose.msra.mxu0 0
    %611 = vmatpush.bf16.xpose.msra.mxu0 0
    %612 = vmatpush.bf16.xpose.msra.mxu0 0
    %613 = vmatpush.bf16.xpose.msra.mxu0 0
    %614 = vmatpush.bf16.xpose.msra.mxu0 %v608
    %615 = vmatpush.bf16.xpose.msra.mxu0 %v605
    %616 = vmatpush.bf16.xpose.msra.mxu0 %v602
    %617 = vmatpush.bf16.xpose.msra.mxu0 %v599
    %618 = vmatmul.bf16.gmra.mxu0 %v593
    %v619 = vpop.f32.mrf.mxu0
    %v620 = vadd.f32 %v570, %v619
    %v621 = vpop.f32.mrf.mxu0
    %v622 = vadd.f32 %v570, %v621
    %623 = vmatmul.bf16.gmra.mxu0 %v596
    %v624 = vpop.f32.mrf.mxu0
    %v625 = vadd.f32 %v570, %v624
    %v626 = vpop.f32.mrf.mxu0
    %v627 = vadd.f32 %v570, %v626
    %628 = vdwg.mxu0
    %v629 = vmul.f32 %v620, 0.17677669
    %v630 = vmul.f32 %v622, 0.17677669
    %v631 = vmul.f32 %v625, 0.17677669
    %v632 = vmul.f32 %v627, 0.17677669
    %v633 = vpack.c.bf16 %v552, %v550
    %v634 = vld [vmem:[%s14] sm:$0xf]
    %v635 = vld [vmem:[%s14 + $0x4] sm:$0xf]
    %v636 = vld [vmem:[%s14 + $0x8] sm:$0xf]
    %v637 = vld [vmem:[%s14 + $0xc] sm:$0xf]
    %v638 = vld [vmem:[%s14 + $0x10] sm:$0xf]
    %v639 = vld [vmem:[%s14 + $0x14] sm:$0xf]
    %v640 = vld [vmem:[%s14 + $0x18] sm:$0xf]
    %v641 = vld [vmem:[%s14 + $0x1c] sm:$0xf]
    %v642 = vld [vmem:[%s14 + $0x20] sm:$0xf]
    %v643 = vld [vmem:[%s14 + $0x24] sm:$0xf]
    %v644 = vld [vmem:[%s14 + $0x28] sm:$0xf]
    %v645 = vld [vmem:[%s14 + $0x2c] sm:$0xf]
    %v646 = vld [vmem:[%s14 + $0x30] sm:$0xf]
    %v647 = vld [vmem:[%s14 + $0x34] sm:$0xf]
    %v648 = vld [vmem:[%s14 + $0x38] sm:$0xf]
    %v649 = vld [vmem:[%s14 + $0x3c] sm:$0xf]
    %v650 = vld [vmem:[%s15] sm:$0x1]
    %v652 = vperm.slane %v650, 0
    %v670 = vunpack.c.l.b16 %v634
    %v671 = vunpack.c.l.b16 %v635
    %v672 = vunpack.c.l.b16 %v636
    %v673 = vunpack.c.l.b16 %v637
    %v674 = vunpack.c.l.b16 %v638
    %v675 = vunpack.c.l.b16 %v639
    %v676 = vunpack.c.l.b16 %v640
    %v677 = vunpack.c.l.b16 %v641
    %v678 = vunpack.c.l.b16 %v642
    %v679 = vunpack.c.l.b16 %v643
    %v680 = vunpack.c.l.b16 %v644
    %v681 = vunpack.c.l.b16 %v645
    %v682 = vunpack.c.l.b16 %v646
    %v683 = vunpack.c.l.b16 %v647
    %v684 = vunpack.c.l.b16 %v648
    %v685 = vunpack.c.l.b16 %v649
    %v686 = vpack.c.b16 %v671, %v670
    %v687 = vpack.c.b16 %v673, %v672
    %v688 = vpack.c.b16 %v675, %v674
    %v689 = vpack.c.b16 %v677, %v676
    %v690 = vpack.c.b16 %v679, %v678
    %v691 = vpack.c.b16 %v681, %v680
    %v692 = vpack.c.b16 %v683, %v682
    %v693 = vpack.c.b16 %v685, %v684
    %v695 = vsel %vm99, %v633, 0
    %v698 = vsel %vm99, %v686, 0
    %v701 = vsel %vm99, %v687, 0
    %v704 = vsel %vm99, %v688, 0
    %v707 = vsel %vm99, %v689, 0
    %v710 = vsel %vm99, %v690, 0
    %v713 = vsel %vm99, %v691, 0
    %v716 = vsel %vm99, %v692, 0
    %v719 = vsel %vm99, %v693, 0
    %721 = vmatpush.bf16.xpose.msra.mxu0 %v719
    %722 = vmatpush.bf16.xpose.msra.mxu0 %v716
    %723 = vmatpush.bf16.xpose.msra.mxu0 %v713
    %724 = vmatpush.bf16.xpose.msra.mxu0 %v710
    %725 = vmatpush.bf16.xpose.msra.mxu0 %v707
    %726 = vmatpush.bf16.xpose.msra.mxu0 %v704
    %727 = vmatpush.bf16.xpose.msra.mxu0 %v701
    %728 = vmatpush.bf16.xpose.msra.mxu0 %v698
    %729 = vmatmul.bf16.gmra.mxu0 %v695
    %v730 = vpop.f32.mrf.mxu0
    %v731 = vadd.f32 %v652, %v730
    %v732 = vpop.f32.mrf.mxu0
    %v733 = vadd.f32 %v652, %v732
    %734 = vdwg.mxu0
    %v735 = vpack.c.bf16 %v630, %v629
    %v736 = vpack.c.bf16 %v731, %v731
    %v738 = vsel %vm99, %v735, 0
    %v741 = vsel %vm99, %v736, 0
    %743 = vmatpush.bf16.xpose.msra.mxu0 0
    %744 = vmatpush.bf16.xpose.msra.mxu0 0
    %745 = vmatpush.bf16.xpose.msra.mxu0 0
    %746 = vmatpush.bf16.xpose.msra.mxu0 0
    %747 = vmatpush.bf16.xpose.msra.mxu0 0
    %748 = vmatpush.bf16.xpose.msra.mxu0 0
    %749 = vmatpush.bf16.xpose.msra.mxu0 0
    %750 = vmatpush.bf16.xpose.msra.mxu0 %v741
    %751 = vmatmul.bf16.gmra.mxu0 %v738
    %v752 = vpop.f32.mrf.mxu0
    %v753 = vadd.f32 0.0, %v752
    %v754 = vpop.f32.mrf.mxu0
    %v755 = vadd.f32 0.0, %v754
    %756 = vdwg.mxu0
    %vm757 = vcmask 64512
    %v758 = vsel %vm757, %v753, -inf
    %759 = vmax.xlane.f32.xlu0 %v758
    %v760 = vpop.xlane.xlu0 %759
    %v761 = vsel %vm757, %v755, -inf
    %762 = vmax.xlane.f32.xlu0 %v761
    %v763 = vpop.xlane.xlu0 %762
    %v764 = vsub.f32 %v753, %v760
    %v765 = vsub.f32 %v755, %v763
    %v766 = vmul.f32 %v764, 1.442695
    %v767 = vpow.pop %v766
    %v768 = vmul.f32 %v765, 1.442695
    %v769 = vpow.pop %v768
    %v770 = vsel %vm757, %v767, 0.0
    %771 = vadd.xlane.f32.xlu0 %v770
    %v772 = vpop.xlane.xlu0 %771
    %v773 = vsel %vm757, %v769, 0.0
    %774 = vadd.xlane.f32.xlu0 %v773
    %v775 = vpop.xlane.xlu0 %774
    %v776 = vrcp.pop %v772
    %v777 = vrcp.pop %v775
    %v778 = vmul.f32 %v767, %v776
    %v779 = vmul.f32 %v769, %v777
    %v780 = vpack.c.bf16 %v779, %v778
    %782 = vrot.lane.b32.xlu0 %v736, 64
    %v783 = vpop.permute.xlu0 %782
    %v785 = vsel %vm757, %v780, 0
    %vm787 = vcmask 1043456
    %v789 = vsel %vm787, %v783, 0
    %791 = vmatpush.bf16.msra.mxu0 0
    %792 = vmatpush.bf16.msra.mxu0 0
    %793 = vmatpush.bf16.msra.mxu0 0
    %794 = vmatpush.bf16.msra.mxu0 0
    %795 = vmatpush.bf16.msra.mxu0 0
    %796 = vmatpush.bf16.msra.mxu0 0
    %797 = vmatpush.bf16.msra.mxu0 0
    %798 = vmatpush.bf16.msra.mxu0 %v789
    %799 = vmatmul.bf16.gmra.mxu0 %v785
    %v800 = vpop.f32.mrf.mxu0
    %v801 = vadd.f32 0.0, %v800
    %v802 = vpop.f32.mrf.mxu0
    %v803 = vadd.f32 0.0, %v802
    %804 = vdwg.mxu0
    %805 = vst.msk [vmem:[#allocation3] sm:$0xff] %vm99, %v801
    %806 = vst.msk [vmem:[#allocation3 + $0x8] sm:$0xff] %vm99, %v803
    %808 = vrot.lane.b32.xlu0 %v735, 96
    %v809 = vpop.permute.xlu0 %808
    %810 = vrot.lane.b32.xlu0 %v736, 96
    %v811 = vpop.permute.xlu0 %810
    %v813 = vsel %vm99, %v809, 0
    %v816 = vsel %vm99, %v811, 0
    %818 = vmatpush.bf16.xpose.msra.mxu0 0
    %819 = vmatpush.bf16.xpose.msra.mxu0 0
    %820 = vmatpush.bf16.xpose.msra.mxu0 0
    %821 = vmatpush.bf16.xpose.msra.mxu0 0
    %822 = vmatpush.bf16.xpose.msra.mxu0 0
    %823 = vmatpush.bf16.xpose.msra.mxu0 0
    %824 = vmatpush.bf16.xpose.msra.mxu0 0
    %825 = vmatpush.bf16.xpose.msra.mxu0 %v816
    %826 = vmatmul.bf16.gmra.mxu0 %v813
    %v827 = vpop.f32.mrf.mxu0
    %v828 = vadd.f32 0.0, %v827
    %v829 = vpop.f32.mrf.mxu0
    %v830 = vadd.f32 0.0, %v829
    %831 = vdwg.mxu0
    %v832 = vsel %vm757, %v828, -inf
    %833 = vmax.xlane.f32.xlu0 %v832
    %v834 = vpop.xlane.xlu0 %833
    %v835 = vsel %vm757, %v830, -inf
    %836 = vmax.xlane.f32.xlu0 %v835
    %v837 = vpop.xlane.xlu0 %836
    %v838 = vsub.f32 %v828, %v834
    %v839 = vsub.f32 %v830, %v837
    %v840 = vmul.f32 %v838, 1.442695
    %v841 = vpow.pop %v840
    %v842 = vmul.f32 %v839, 1.442695
    %v843 = vpow.pop %v842
    %v844 = vsel %vm757, %v841, 0.0
    %845 = vadd.xlane.f32.xlu0 %v844
    %v846 = vpop.xlane.xlu0 %845
    %v847 = vsel %vm757, %v843, 0.0
    %848 = vadd.xlane.f32.xlu0 %v847
    %v849 = vpop.xlane.xlu0 %848
    %v850 = vrcp.pop %v846
    %v851 = vrcp.pop %v849
    %v852 = vmul.f32 %v841, %v850
    %v853 = vmul.f32 %v843, %v851
    %v854 = vpack.c.bf16 %v853, %v852
    %855 = vrot.lane.b32.xlu0 %v736, 32
    %v856 = vpop.permute.xlu0 %855
    %v858 = vsel %vm757, %v854, 0
    %v861 = vsel %vm787, %v856, 0
    %863 = vmatpush.bf16.msra.mxu0 0
    %864 = vmatpush.bf16.msra.mxu0 0
    %865 = vmatpush.bf16.msra.mxu0 0
    %866 = vmatpush.bf16.msra.mxu0 0
    %867 = vmatpush.bf16.msra.mxu0 0
    %868 = vmatpush.bf16.msra.mxu0 0
    %869 = vmatpush.bf16.msra.mxu0 0
    %870 = vmatpush.bf16.msra.mxu0 %v861
    %871 = vmatmul.bf16.gmra.mxu0 %v858
    %v872 = vpop.f32.mrf.mxu0
    %v873 = vadd.f32 0.0, %v872
    %v874 = vpop.f32.mrf.mxu0
    %v875 = vadd.f32 0.0, %v874
    %876 = vdwg.mxu0
    %879 = vrot.lane.b32.xlu0 %v873, 32
    %v880 = vpop.permute.xlu0 %879
    %881 = vrot.lane.b32.xlu0 %v875, 32
    %v882 = vpop.permute.xlu0 %881
    %885 = vst.msk [vmem:[#allocation3] sm:$0xff] %vm394, %v880
    %886 = vst.msk [vmem:[#allocation3 + $0x8] sm:$0xff] %vm394, %v882
    %v887 = vpack.c.bf16 %v632, %v631
    %v888 = vpack.c.bf16 %v733, %v733
    %v890 = vsel %vm99, %v887, 0
    %v893 = vsel %vm99, %v888, 0
    %895 = vmatpush.bf16.xpose.msra.mxu0 0
    %896 = vmatpush.bf16.xpose.msra.mxu0 0
    %897 = vmatpush.bf16.xpose.msra.mxu0 0
    %898 = vmatpush.bf16.xpose.msra.mxu0 0
    %899 = vmatpush.bf16.xpose.msra.mxu0 0
    %900 = vmatpush.bf16.xpose.msra.mxu0 0
    %901 = vmatpush.bf16.xpose.msra.mxu0 0
    %902 = vmatpush.bf16.xpose.msra.mxu0 %v893
    %903 = vmatmul.bf16.gmra.mxu0 %v890
    %v904 = vpop.f32.mrf.mxu0
    %v905 = vadd.f32 0.0, %v904
    %v906 = vpop.f32.mrf.mxu0
    %v907 = vadd.f32 0.0, %v906
    %908 = vdwg.mxu0
    %v909 = vsel %vm757, %v905, -inf
    %910 = vmax.xlane.f32.xlu0 %v909
    %v911 = vpop.xlane.xlu0 %910
    %v912 = vsel %vm757, %v907, -inf
    %913 = vmax.xlane.f32.xlu0 %v912
    %v914 = vpop.xlane.xlu0 %913
    %v915 = vsub.f32 %v905, %v911
    %v916 = vsub.f32 %v907, %v914
    %v917 = vmul.f32 %v915, 1.442695
    %v918 = vpow.pop %v917
    %v919 = vmul.f32 %v916, 1.442695
    %v920 = vpow.pop %v919
    %v921 = vsel %vm757, %v918, 0.0
    %922 = vadd.xlane.f32.xlu0 %v921
    %v923 = vpop.xlane.xlu0 %922
    %v924 = vsel %vm757, %v920, 0.0
    %925 = vadd.xlane.f32.xlu0 %v924
    %v926 = vpop.xlane.xlu0 %925
    %v927 = vrcp.pop %v923
    %v928 = vrcp.pop %v926
    %v929 = vmul.f32 %v918, %v927
    %v930 = vmul.f32 %v920, %v928
    %v931 = vpack.c.bf16 %v930, %v929
    %933 = vrot.lane.b32.xlu0 %v888, 64
    %v934 = vpop.permute.xlu0 %933
    %v936 = vsel %vm757, %v931, 0
    %v939 = vsel %vm787, %v934, 0
    %941 = vmatpush.bf16.msra.mxu0 0
    %942 = vmatpush.bf16.msra.mxu0 0
    %943 = vmatpush.bf16.msra.mxu0 0
    %944 = vmatpush.bf16.msra.mxu0 0
    %945 = vmatpush.bf16.msra.mxu0 0
    %946 = vmatpush.bf16.msra.mxu0 0
    %947 = vmatpush.bf16.msra.mxu0 0
    %948 = vmatpush.bf16.msra.mxu0 %v939
    %949 = vmatmul.bf16.gmra.mxu0 %v936
    %v950 = vpop.f32.mrf.mxu0
    %v951 = vadd.f32 0.0, %v950
    %v952 = vpop.f32.mrf.mxu0
    %v953 = vadd.f32 0.0, %v952
    %954 = vdwg.mxu0
    %955 = vst.msk [vmem:[#allocation3 + $0x10] sm:$0xff] %vm99, %v951
    %956 = vst.msk [vmem:[#allocation3 + $0x18] sm:$0xff] %vm99, %v953
    %958 = vrot.lane.b32.xlu0 %v887, 96
    %v959 = vpop.permute.xlu0 %958
    %960 = vrot.lane.b32.xlu0 %v888, 96
    %v961 = vpop.permute.xlu0 %960
    %v963 = vsel %vm99, %v959, 0
    %v966 = vsel %vm99, %v961, 0
    %968 = vmatpush.bf16.xpose.msra.mxu0 0
    %969 = vmatpush.bf16.xpose.msra.mxu0 0
    %970 = vmatpush.bf16.xpose.msra.mxu0 0
    %971 = vmatpush.bf16.xpose.msra.mxu0 0
    %972 = vmatpush.bf16.xpose.msra.mxu0 0
    %973 = vmatpush.bf16.xpose.msra.mxu0 0
    %974 = vmatpush.bf16.xpose.msra.mxu0 0
    %975 = vmatpush.bf16.xpose.msra.mxu0 %v966
    %976 = vmatmul.bf16.gmra.mxu0 %v963
    %v977 = vpop.f32.mrf.mxu0
    %v978 = vadd.f32 0.0, %v977
    %v979 = vpop.f32.mrf.mxu0
    %v980 = vadd.f32 0.0, %v979
    %981 = vdwg.mxu0
    %v982 = vsel %vm757, %v978, -inf
    %983 = vmax.xlane.f32.xlu0 %v982
    %v984 = vpop.xlane.xlu0 %983
    %v985 = vsel %vm757, %v980, -inf
    %986 = vmax.xlane.f32.xlu0 %v985
    %v987 = vpop.xlane.xlu0 %986
    %v988 = vsub.f32 %v978, %v984
    %v989 = vsub.f32 %v980, %v987
    %v990 = vmul.f32 %v988, 1.442695
    %v991 = vpow.pop %v990
    %v992 = vmul.f32 %v989, 1.442695
    %v993 = vpow.pop %v992
    %v994 = vsel %vm757, %v991, 0.0
    %995 = vadd.xlane.f32.xlu0 %v994
    %v996 = vpop.xlane.xlu0 %995
    %v997 = vsel %vm757, %v993, 0.0
    %998 = vadd.xlane.f32.xlu0 %v997
    %v999 = vpop.xlane.xlu0 %998
    %v1000 = vrcp.pop %v996
    %v1001 = vrcp.pop %v999
    %v1002 = vmul.f32 %v991, %v1000
    %v1003 = vmul.f32 %v993, %v1001
    %v1004 = vpack.c.bf16 %v1003, %v1002
    %1005 = vrot.lane.b32.xlu0 %v888, 32
    %v1006 = vpop.permute.xlu0 %1005
    %v1008 = vsel %vm757, %v1004, 0
    %v1011 = vsel %vm787, %v1006, 0
    %1013 = vmatpush.bf16.msra.mxu0 0
    %1014 = vmatpush.bf16.msra.mxu0 0
    %1015 = vmatpush.bf16.msra.mxu0 0
    %1016 = vmatpush.bf16.msra.mxu0 0
    %1017 = vmatpush.bf16.msra.mxu0 0
    %1018 = vmatpush.bf16.msra.mxu0 0
    %1019 = vmatpush.bf16.msra.mxu0 0
    %1020 = vmatpush.bf16.msra.mxu0 %v1011
    %1021 = vmatmul.bf16.gmra.mxu0 %v1008
    %v1022 = vpop.f32.mrf.mxu0
    %v1023 = vadd.f32 0.0, %v1022
    %v1024 = vpop.f32.mrf.mxu0
    %v1025 = vadd.f32 0.0, %v1024
    %1026 = vdwg.mxu0
    %1029 = vrot.lane.b32.xlu0 %v1023, 32
    %v1030 = vpop.permute.xlu0 %1029
    %1031 = vrot.lane.b32.xlu0 %v1025, 32
    %v1032 = vpop.permute.xlu0 %1031
    %1035 = vst.msk [vmem:[#allocation3 + $0x10] sm:$0xff] %vm394, %v1030
    %1036 = vst.msk [vmem:[#allocation3 + $0x18] sm:$0xff] %vm394, %v1032
    %v1037 = vld [vmem:[#allocation3] sm:$0xff]
    %v1038 = vld [vmem:[#allocation3 + $0x8] sm:$0xff]
    %v1039 = vld [vmem:[#allocation3 + $0x10] sm:$0xff]
    %v1040 = vld [vmem:[#allocation3 + $0x18] sm:$0xff]
    %v1041 = vpack.c.bf16 %v1038, %v1037
    %v1042 = vpack.c.bf16 %v1040, %v1039
    %v1043 = vld [vmem:[%s16] sm:$0xf]
    %v1044 = vld [vmem:[%s16 + $0x4] sm:$0xf]
    %v1045 = vld [vmem:[%s16 + $0x8] sm:$0xf]
    %v1046 = vld [vmem:[%s16 + $0xc] sm:$0xf]
    %v1047 = vld [vmem:[%s17] sm:$0x1]
    %v1049 = vperm.slane %v1047, 0
    %v1055 = vunpack.c.l.b16 %v1043
    %v1056 = vunpack.c.l.b16 %v1044
    %v1057 = vunpack.c.l.b16 %v1045
    %v1058 = vunpack.c.l.b16 %v1046
    %v1059 = vpack.c.b16 %v1056, %v1055
    %v1060 = vpack.c.b16 %v1058, %v1057
    %v1062 = vsel %vm530, %v1041, 0
    %v1065 = vsel %vm530, %v1042, 0
    %v1068 = vsel %vm530, %v1059, 0
    %v1071 = vsel %vm530, %v1060, 0
    %1073 = vmatpush.bf16.xpose.msra.mxu0 0
    %1074 = vmatpush.bf16.xpose.msra.mxu0 0
    %1075 = vmatpush.bf16.xpose.msra.mxu0 0
    %1076 = vmatpush.bf16.xpose.msra.mxu0 0
    %1077 = vmatpush.bf16.xpose.msra.mxu0 0
    %1078 = vmatpush.bf16.xpose.msra.mxu0 0
    %1079 = vmatpush.bf16.xpose.msra.mxu0 %v1071
    %1080 = vmatpush.bf16.xpose.msra.mxu0 %v1068
    %1081 = vmatmul.bf16.gmra.mxu0 %v1062
    %v1082 = vpop.f32.mrf.mxu0
    %v1083 = vadd.f32 %v1049, %v1082
    %v1084 = vpop.f32.mrf.mxu0
    %v1085 = vadd.f32 %v1049, %v1084
    %1086 = vmatmul.bf16.gmra.mxu0 %v1065
    %v1087 = vpop.f32.mrf.mxu0
    %v1088 = vadd.f32 %v1049, %v1087
    %v1089 = vpop.f32.mrf.mxu0
    %v1090 = vadd.f32 %v1049, %v1089
    %1091 = vdwg.mxu0
    %1092 = vst.msk [vmem:[#allocation6] sm:$0xff] %vm99, %v550
    %1093 = vst.msk [vmem:[#allocation6 + $0x8] sm:$0xff] %vm99, %v552
    %1094 = vst.msk [vmem:[#allocation4] sm:$0xff] %vm99, %v1083
    %1095 = vst.msk [vmem:[#allocation4 + $0x8] sm:$0xff] %vm99, %v1085
    %1096 = vst.msk [vmem:[#allocation4 + $0x10] sm:$0xff] %vm99, %v1088
    %1097 = vst.msk [vmem:[#allocation4 + $0x18] sm:$0xff] %vm99, %v1090
    // Predicated region
    $region74: #{luna_forward.1} parent=1 // pred_check
      _
    $region75: #{luna_forward.1} parent=1 // pred_check_branch
      %1099 = sbr.rel (0) target = $region77
    $region76: #{luna_forward.1} parent=1 // pred_region
      %1101 = vsyncadd [#allocation5], 0
      %s1102 = sshll.u32 [#allocation4], 4
      %s1103 = int_to_ptr.vmem [resolvable:$true] %s1102
      %s1104 = sshll.u32 %s18, 4
      %s1105 = int_to_ptr.hbm [resolvable:$true] %s1104
      %1110 = dma.vmem_to_hbm [thread:$0]  %s1103, 512, %s1105, [#allocation5], 128, 128, 8
    $region77: #{luna_forward.1} parent=1 // pred_fallthru
      _
    // Predicated region
    $region78: #{luna_forward.1} parent=1 // pred_check
      _
    $region79: #{luna_forward.1} parent=1 // pred_check_branch
      %1112 = sbr.rel (0) target = $region81
    $region80: #{luna_forward.1} parent=1 // pred_region
      %1114 = vsyncadd [#allocation7], 0
      %s1115 = sshll.u32 [#allocation6], 4
      %s1116 = int_to_ptr.vmem [resolvable:$true] %s1115
      %s1117 = sshll.u32 %s19, 4
      %s1118 = int_to_ptr.hbm [resolvable:$true] %s1117
      %1123 = dma.vmem_to_hbm [thread:$0]  %s1116, 256, %s1118, [#allocation7], 128, 128, 8
    $region81: #{luna_forward.1} parent=1 // pred_fallthru
      _
    // Predicated region
    $region82: #{luna_forward.1} parent=1 // pred_check
      _
    $region83: #{luna_forward.1} parent=1 // pred_check_branch
      %1125 = sbr.rel (0) target = $region85
    $region84: #{luna_forward.1} parent=1 // pred_region
      %1127 = dma.done [#allocation5], 512
    $region85: #{luna_forward.1} parent=1 // pred_fallthru
      _
    // Predicated region
    $region86: #{luna_forward.1} parent=1 // pred_check
      _
    $region87: #{luna_forward.1} parent=1 // pred_check_branch
      %1129 = sbr.rel (0) target = $region89
    $region88: #{luna_forward.1} parent=1 // pred_region
      %1131 = dma.done [#allocation7], 256
    $region89: #{luna_forward.1} parent=1 // pred_fallthru
      _
    %1132 = vsyncpa [#allocation5], 1
    %1133 = vsyncpa [#allocation7], 1

</llo_original>
